<compile_context>
chip_gen: v5e
topology: v5e:2x2
jax: 0.10.0
libtpu: 0.0.40
codegen_flags: <defaults>
</compile_context>

<pallas_src>
import functools

import jax
import jax.numpy as jnp
import numpy as np
from jax.experimental import pallas as pl
from jax.experimental.pallas import tpu as pltpu


def _round_up(x, m):
    return ((x + m - 1) // m) * m


def _vmem_limits():
    """Generation-aware (budget, compiler limit) in bytes; safe fallback."""
    try:
        cap = int(pltpu.get_tpu_info().vmem_capacity_bytes)
    except Exception:
        cap = 64 * 1024 * 1024
    if cap <= 64 * 1024 * 1024:          # v7x-class: 64 MiB per TensorCore
        limit = 32 * 1024 * 1024
    else:                                 # v5e / v6e: 128 MiB physical
        limit = 96 * 1024 * 1024
    budget = min(limit - 8 * 1024 * 1024, 64 * 1024 * 1024)
    return budget, limit


_VMEM_BUDGET, _VMEM_LIMIT = _vmem_limits()


def _pick_cout_tiling(c_out):
    """Pad C_out to a lane-dense width; prefer 256-wide tiles when cheap."""
    c_p = _round_up(c_out, 128)
    if c_p % 256 != 0:
        c_256 = _round_up(c_out, 256)
        if c_256 - c_out <= c_out // 4:   # <=25% padding overhead
            c_p = c_256
    tn = 256 if c_p % 256 == 0 else 128
    return c_p, tn


# ----------------------------------------------------------------------------
# Fused direct-conv kernel (stride == 1).
# ----------------------------------------------------------------------------
def _fused_conv_bn_relu_kernel(x_ref, w_ref, scale_ref, bias_ref, o_ref,
                               *, kh, kw, dil, c_in, wp, m_b):
    """One (batch, C_out-tile) block of relu(conv(x) * scale + bias).

    x_ref:     (1, C_in, L)      bf16  flattened zero-padded input slab
    w_ref:     (tn, kh*kw*C_in)  bf16  weights, K ordered (i, j, c)
    scale_ref: (tn, 1)           f32   BN scale  gamma / sqrt(var + eps)
    bias_ref:  (tn, 1)           f32   BN bias   beta - mean * scale
    o_ref:     (1, tn, M_b)      f32   channel-major output rows (h*Wp + w)
    """
    wv = w_ref[...]                                   # (tn, K_tot)
    acc = None
    for i in range(kh):                               # statically unrolled taps
        for j in range(kw):
            t = i * kw + j
            off = i * dil * wp + j * dil
            x_win = x_ref[0, :, off:off + m_b]        # (C_in, M_b) contiguous window
            w_t = wv[:, t * c_in:(t + 1) * c_in]      # (tn, C_in)
            part = jnp.dot(w_t, x_win, preferred_element_type=jnp.float32)
            acc = part if acc is None else acc + part
    y = acc * scale_ref[...] + bias_ref[...]          # BN on the f32 accumulator
    o_ref[0] = jnp.maximum(y, 0.0).astype(o_ref.dtype)


# ----------------------------------------------------------------------------
# im2col fallback kernel (stride > 1 or oversized working set).
# ----------------------------------------------------------------------------
def _matmul_bn_relu_kernel(p_ref, w_ref, scale_ref, bias_ref, o_ref):
    """One (tm, tn) tile of relu( patches @ weight * scale + bias )."""
    acc = jnp.dot(p_ref[...], w_ref[...], preferred_element_type=jnp.float32)
    y = acc * scale_ref[...] + bias_ref[...]
    o_ref[...] = jnp.maximum(y, 0.0).astype(o_ref.dtype)


def _im2col_nhwc(x_nhwc, kh, kw, stride, padding, dilation):
    """(N, H, W, C) -> patches (N*Ho*Wo, kh*kw*C) with (i, j, c) K ordering."""
    n, h, w, c = x_nhwc.shape
    xp = jnp.pad(x_nhwc, ((0, 0), (padding, padding), (padding, padding), (0, 0)))
    h_out = (h + 2 * padding - dilation * (kh - 1) - 1) // stride + 1
    w_out = (w + 2 * padding - dilation * (kw - 1) - 1) // stride + 1
    taps = []
    for i in range(kh):
        for j in range(kw):
            taps.append(
                xp[:,
                   i * dilation: i * dilation + stride * h_out: stride,
                   j * dilation: j * dilation + stride * w_out: stride,
                   :])
    p = jnp.stack(taps, axis=3)                       # (N, Ho, Wo, kh*kw, C)
    p = p.reshape(n * h_out * w_out, kh * kw * c)     # (M, K)
    return p, h_out, w_out


def _pick_tile_m(m, k, tn, budget):
    """Largest M tile whose double-buffered working set fits the budget."""
    tm = 128
    for cand in (2048, 1024, 512, 256, 128):
        need = 2 * (cand * k * 2 + k * tn * 2 + cand * tn * 4)
        if need <= budget:
            tm = cand
            break
    return min(tm, _round_up(m, 8))


# ----------------------------------------------------------------------------
# Wrapper.
# ----------------------------------------------------------------------------
@functools.partial(jax.jit, static_argnames=("stride", "padding", "dilation"))
def bn_conv2d_forward(x, weight, gamma, beta, running_mean, running_var,
                      *, stride=1, padding=1, dilation=1, eps=1e-5):
    """BN_Conv2d forward: relu(batchnorm(conv2d(x))), eval-mode BN.

    x:      (N, C_in, H, W)       float32, NCHW
    weight: (C_out, C_in, kh, kw) float32   (groups=1, bias=False)
    """
    n, c_in, h, w = x.shape
    c_out, _, kh, kw = weight.shape

    scale = gamma / jnp.sqrt(running_var + eps)       # (C_out,)
    bias = beta - running_mean * scale                # (C_out,)
    c_p, tn = _pick_cout_tiling(c_out)
    n_ct = c_p // tn

    h_out = (h + 2 * padding - dilation * (kh - 1) - 1) // stride + 1
    w_out = (w + 2 * padding - dilation * (kw - 1) - 1) // stride + 1

    # ------------------------------ fused path ------------------------------
    if stride == 1:
        hp, wp = h + 2 * padding, w + 2 * padding
        m_b = h_out * wp                              # includes (kw-1)*dil slack cols
        off_max = (kh - 1) * dilation * wp + (kw - 1) * dilation
        L = m_b + off_max                             # == hp*wp + (kw-1)*dil
        k_tot = kh * kw * c_in
        need = (2 * (c_in * L * 2)            # x slab, double-buffered, bf16
                + 2 * (tn * k_tot * 2)        # weight tile, double-buffered
                + 4 * (tn * 4)                # scale + bias tiles
                + 2 * (tn * m_b * 4)          # output tile, double-buffered
                + tn * m_b * 4)               # f32 accumulator
        if need <= _VMEM_BUDGET:
            # Input: pad spatially in NCHW, flatten, zero tail. Single bf16 copy,
            # no NCHW->NHWC transpose, no 9x patch expansion.
            xp = jnp.pad(x.astype(jnp.bfloat16),
                         ((0, 0), (0, 0), (padding, padding), (padding, padding)))
            x_flat = xp.reshape(n, c_in, hp * wp)
            x_flat = jnp.pad(x_flat, ((0, 0), (0, 0), (0, L - hp * wp)))

            # Weight (C_out, C_in, kh, kw) -> (C_p, kh*kw*C_in), K = (i, j, c).
            w2 = jnp.transpose(weight, (0, 2, 3, 1)).reshape(c_out, k_tot)
            w2 = jnp.pad(w2, ((0, c_p - c_out), (0, 0))).astype(jnp.bfloat16)
            scale_p = jnp.pad(scale, (0, c_p - c_out)).reshape(c_p, 1).astype(jnp.float32)
            bias_p = jnp.pad(bias, (0, c_p - c_out)).reshape(c_p, 1).astype(jnp.float32)

            kernel = functools.partial(
                _fused_conv_bn_relu_kernel, kh=kh, kw=kw, dil=dilation,
                c_in=c_in, wp=wp, m_b=m_b)
            cost = pl.CostEstimate(
                flops=2 * n * m_b * k_tot * c_p,
                transcendentals=0,
                bytes_accessed=n * c_in * L * 2 + c_p * k_tot * 2
                               + 2 * c_p * 4 + n * c_p * m_b * 4)

            out = pl.pallas_call(
                kernel,
                out_shape=jax.ShapeDtypeStruct((n, c_p, m_b), jnp.float32),
                grid_spec=pltpu.PrefetchScalarGridSpec(
                    num_scalar_prefetch=0,
                    # Batch outermost (megacore-shardable even when n_ct == 1);
                    # the batch slab stays resident across the inner C_out tiles.
                    grid=(n, n_ct),
                    in_specs=[
                        pl.BlockSpec((1, c_in, L), lambda b, j: (b, 0, 0)),
                        pl.BlockSpec((tn, k_tot), lambda b, j: (j, 0)),
                        pl.BlockSpec((tn, 1), lambda b, j: (j, 0)),
                        pl.BlockSpec((tn, 1), lambda b, j: (j, 0)),
                    ],
                    out_specs=pl.BlockSpec((1, tn, m_b), lambda b, j: (b, j, 0)),
                ),
                compiler_params=pltpu.CompilerParams(
                    dimension_semantics=("parallel", "parallel"),
                    vmem_limit_bytes=_VMEM_LIMIT),
                cost_estimate=cost,
            )(x_flat, w2, scale_p, bias_p)

            # Channel-major output -> NCHW via a free reshape + cheap slice
            # (drops padded channels and the (kw-1)*dil slack columns per row).
            out = out.reshape(n, c_p, h_out, wp)[:, :c_out, :, :w_out]
            return out

    # ---------------------------- im2col fallback ---------------------------
    x_nhwc = jnp.transpose(x.astype(jnp.bfloat16), (0, 2, 3, 1))
    patches, h_out, w_out = _im2col_nhwc(x_nhwc, kh, kw, stride, padding, dilation)
    m, k = patches.shape

    w_mat = jnp.transpose(weight, (2, 3, 1, 0)).reshape(k, c_out).astype(jnp.bfloat16)
    w_mat = jnp.pad(w_mat, ((0, 0), (0, c_p - c_out)))
    scale_p = jnp.pad(scale, (0, c_p - c_out)).reshape(1, c_p).astype(jnp.float32)
    bias_p = jnp.pad(bias, (0, c_p - c_out)).reshape(1, c_p).astype(jnp.float32)

    tm = _pick_tile_m(m, k, tn, _VMEM_BUDGET)
    n_mt = pl.cdiv(m, tm)

    if n_ct == 1:
        # M tiles outermost so the large parallel axis is megacore-shardable.
        grid = (n_mt, n_ct)
        p_map = lambda i, j: (i, 0)
        w_map = lambda i, j: (0, j)
        v_map = lambda i, j: (0, j)
        o_map = lambda i, j: (i, j)
    else:
        # C tiles outermost: the weight column block stays resident over M steps.
        grid = (n_ct, n_mt)
        p_map = lambda j, i: (i, 0)
        w_map = lambda j, i: (0, j)
        v_map = lambda j, i: (0, j)
        o_map = lambda j, i: (i, j)

    cost = pl.CostEstimate(
        flops=2 * m * k * c_p,
        transcendentals=0,
        bytes_accessed=m * k * 2 + k * c_p * 2 + 2 * c_p * 4 + m * c_p * 4)

    out_p = pl.pallas_call(
        _matmul_bn_relu_kernel,
        out_shape=jax.ShapeDtypeStruct((m, c_p), jnp.float32),
        grid_spec=pltpu.PrefetchScalarGridSpec(
            num_scalar_prefetch=0,
            grid=grid,
            in_specs=[
                pl.BlockSpec((tm, k), p_map),     # patches (bf16), full-K block
                pl.BlockSpec((k, tn), w_map),     # weight  (bf16)
                pl.BlockSpec((1, tn), v_map),     # BN scale (f32)
                pl.BlockSpec((1, tn), v_map),     # BN bias  (f32)
            ],
            out_specs=pl.BlockSpec((tm, tn), o_map),
        ),
        compiler_params=pltpu.CompilerParams(
            dimension_semantics=("parallel", "parallel"),
            vmem_limit_bytes=_VMEM_LIMIT),
        cost_estimate=cost,
    )(patches, w_mat, scale_p, bias_p)

    out = out_p[:, :c_out] if c_p != c_out else out_p
    out = out.reshape(n, h_out, w_out, c_out)
    return jnp.transpose(out, (0, 3, 1, 2))


# ----------------------------------------------------------------------------
# Reference + demo.
# ----------------------------------------------------------------------------
def _reference(x, weight, gamma, beta, running_mean, running_var,
               stride, padding, dilation, eps=1e-5):
    y = jax.lax.conv_general_dilated(
        x, weight,
        window_strides=(stride, stride),
        padding=[(padding, padding), (padding, padding)],
        rhs_dilation=(dilation, dilation),
        dimension_numbers=("NCHW", "OIHW", "NCHW"))
    s = (gamma / jnp.sqrt(running_var + eps))[None, :, None, None]
    b = (beta - running_mean * gamma / jnp.sqrt(running_var + eps))[None, :, None, None]
    return jnp.maximum(y * s + b, 0.0)


if __name__ == "__main__":
    # Small shapes consistent with the module: Conv2d(4 -> 8, k=3, s=1, p=1).
    N, C_IN, H, W = 2, 4, 16, 16
    C_OUT, KH, KW = 8, 3, 3
    STRIDE, PADDING, DILATION = 1, 1, 1

    key = jax.random.PRNGKey(0)
    kx, kw_, kg, kb, km, kv = jax.random.split(key, 6)

    x = jax.random.normal(kx, (N, C_IN, H, W), jnp.float32)
    weight = jax.random.normal(kw_, (C_OUT, C_IN, KH, KW), jnp.float32) * 0.1
    gamma = 1.0 + 0.1 * jax.random.normal(kg, (C_OUT,), jnp.float32)
    beta = 0.1 * jax.random.normal(kb, (C_OUT,), jnp.float32)
    running_mean = 0.1 * jax.random.normal(km, (C_OUT,), jnp.float32)
    running_var = 1.0 + 0.1 * jax.random.uniform(kv, (C_OUT,), jnp.float32)

    out = bn_conv2d_forward(x, weight, gamma, beta, running_mean, running_var,
                            stride=STRIDE, padding=PADDING, dilation=DILATION)
    out = jax.block_until_ready(out)

    ref = _reference(x, weight, gamma, beta, running_mean, running_var,
                     STRIDE, PADDING, DILATION)
    # bf16 MXU inputs with f32 accumulation; BN affine applied on the f32 acc.
    np.testing.assert_allclose(np.asarray(out), np.asarray(ref), rtol=2e-2, atol=2e-2)

    print("KERNEL_OK")
</pallas_src>

<mosaic_0001>
module attributes {stable_mosaic.version = 11 : i64} {
  func.func @_fused_conv_bn_relu_kernel(%arg0: i32, %arg1: i32, %arg2: memref<1x4x326xbf16, #tpu.memory_space<vmem>>, %arg3: memref<128x36xbf16, #tpu.memory_space<vmem>>, %arg4: memref<128x1xf32, #tpu.memory_space<vmem>>, %arg5: memref<128x1xf32, #tpu.memory_space<vmem>>, %arg6: memref<1x128x288xf32, #tpu.memory_space<vmem>>) attributes {dimension_semantics = [#tpu.dimension_semantics<parallel>, #tpu.dimension_semantics<parallel>], iteration_bounds = array<i64: 2, 1>, scalar_prefetch = 0 : i64, scratch_operands = 0 : i64, tpu.core_type = #tpu.core_type<tc>, window_params = [{transform_indices = @transform_0, window_bounds = array<i64: 1, 4, 326>}, {transform_indices = @transform_1, window_bounds = array<i64: 128, 36>}, {transform_indices = @transform_2, window_bounds = array<i64: 128, 1>}, {transform_indices = @transform_3, window_bounds = array<i64: 128, 1>}, {transform_indices = @transform_4, window_bounds = array<i64: 1, 128, 288>}]} {
    %c0 = arith.constant 0 : index
    %c0_0 = arith.constant 0 : index
    %0 = vector.load %arg3[%c0, %c0_0] : memref<128x36xbf16, #tpu.memory_space<vmem>>, vector<128x36xbf16>
    %c0_1 = arith.constant 0 : index
    %c0_2 = arith.constant 0 : index
    %c0_3 = arith.constant 0 : index
    %1 = vector.load %arg2[%c0_1, %c0_2, %c0_3] : memref<1x4x326xbf16, #tpu.memory_space<vmem>>, vector<1x4x288xbf16>
    %2 = vector.shape_cast %1 : vector<1x4x288xbf16> to vector<4x288xbf16>
    %3 = vector.extract_strided_slice %0 {offsets = [0, 0], sizes = [128, 4], strides = [1, 1]} : vector<128x36xbf16> to vector<128x4xbf16>
    %cst = arith.constant dense<0.000000e+00> : vector<128x288xf32>
    %4 = tpu.matmul %3, %2, %cst {dimension_numbers = #tpu.dot_dimension_numbers<[1], [0], [0], [1], [0, 0, 1, 1], [], []>} : vector<128x4xbf16>, vector<4x288xbf16>, vector<128x288xf32> -> vector<128x288xf32>
    %c0_4 = arith.constant 0 : index
    %c0_5 = arith.constant 0 : index
    %c1 = arith.constant 1 : index
    %5 = vector.load %arg2[%c0_4, %c0_5, %c1] : memref<1x4x326xbf16, #tpu.memory_space<vmem>>, vector<1x4x288xbf16>
    %6 = vector.shape_cast %5 : vector<1x4x288xbf16> to vector<4x288xbf16>
    %7 = vector.extract_strided_slice %0 {offsets = [0, 4], sizes = [128, 4], strides = [1, 1]} : vector<128x36xbf16> to vector<128x4xbf16>
    %cst_6 = arith.constant dense<0.000000e+00> : vector<128x288xf32>
    %8 = tpu.matmul %7, %6, %cst_6 {dimension_numbers = #tpu.dot_dimension_numbers<[1], [0], [0], [1], [0, 0, 1, 1], [], []>} : vector<128x4xbf16>, vector<4x288xbf16>, vector<128x288xf32> -> vector<128x288xf32>
    %9 = arith.addf %4, %8 : vector<128x288xf32>
    %c0_7 = arith.constant 0 : index
    %c0_8 = arith.constant 0 : index
    %c2 = arith.constant 2 : index
    %10 = vector.load %arg2[%c0_7, %c0_8, %c2] : memref<1x4x326xbf16, #tpu.memory_space<vmem>>, vector<1x4x288xbf16>
    %11 = vector.shape_cast %10 : vector<1x4x288xbf16> to vector<4x288xbf16>
    %12 = vector.extract_strided_slice %0 {offsets = [0, 8], sizes = [128, 4], strides = [1, 1]} : vector<128x36xbf16> to vector<128x4xbf16>
    %cst_9 = arith.constant dense<0.000000e+00> : vector<128x288xf32>
    %13 = tpu.matmul %12, %11, %cst_9 {dimension_numbers = #tpu.dot_dimension_numbers<[1], [0], [0], [1], [0, 0, 1, 1], [], []>} : vector<128x4xbf16>, vector<4x288xbf16>, vector<128x288xf32> -> vector<128x288xf32>
    %14 = arith.addf %9, %13 : vector<128x288xf32>
    %c0_10 = arith.constant 0 : index
    %c0_11 = arith.constant 0 : index
    %c18 = arith.constant 18 : index
    %15 = vector.load %arg2[%c0_10, %c0_11, %c18] : memref<1x4x326xbf16, #tpu.memory_space<vmem>>, vector<1x4x288xbf16>
    %16 = vector.shape_cast %15 : vector<1x4x288xbf16> to vector<4x288xbf16>
    %17 = vector.extract_strided_slice %0 {offsets = [0, 12], sizes = [128, 4], strides = [1, 1]} : vector<128x36xbf16> to vector<128x4xbf16>
    %cst_12 = arith.constant dense<0.000000e+00> : vector<128x288xf32>
    %18 = tpu.matmul %17, %16, %cst_12 {dimension_numbers = #tpu.dot_dimension_numbers<[1], [0], [0], [1], [0, 0, 1, 1], [], []>} : vector<128x4xbf16>, vector<4x288xbf16>, vector<128x288xf32> -> vector<128x288xf32>
    %19 = arith.addf %14, %18 : vector<128x288xf32>
    %c0_13 = arith.constant 0 : index
    %c0_14 = arith.constant 0 : index
    %c19 = arith.constant 19 : index
    %20 = vector.load %arg2[%c0_13, %c0_14, %c19] : memref<1x4x326xbf16, #tpu.memory_space<vmem>>, vector<1x4x288xbf16>
    %21 = vector.shape_cast %20 : vector<1x4x288xbf16> to vector<4x288xbf16>
    %22 = vector.extract_strided_slice %0 {offsets = [0, 16], sizes = [128, 4], strides = [1, 1]} : vector<128x36xbf16> to vector<128x4xbf16>
    %cst_15 = arith.constant dense<0.000000e+00> : vector<128x288xf32>
    %23 = tpu.matmul %22, %21, %cst_15 {dimension_numbers = #tpu.dot_dimension_numbers<[1], [0], [0], [1], [0, 0, 1, 1], [], []>} : vector<128x4xbf16>, vector<4x288xbf16>, vector<128x288xf32> -> vector<128x288xf32>
    %24 = arith.addf %19, %23 : vector<128x288xf32>
    %c0_16 = arith.constant 0 : index
    %c0_17 = arith.constant 0 : index
    %c20 = arith.constant 20 : index
    %25 = vector.load %arg2[%c0_16, %c0_17, %c20] : memref<1x4x326xbf16, #tpu.memory_space<vmem>>, vector<1x4x288xbf16>
    %26 = vector.shape_cast %25 : vector<1x4x288xbf16> to vector<4x288xbf16>
    %27 = vector.extract_strided_slice %0 {offsets = [0, 20], sizes = [128, 4], strides = [1, 1]} : vector<128x36xbf16> to vector<128x4xbf16>
    %cst_18 = arith.constant dense<0.000000e+00> : vector<128x288xf32>
    %28 = tpu.matmul %27, %26, %cst_18 {dimension_numbers = #tpu.dot_dimension_numbers<[1], [0], [0], [1], [0, 0, 1, 1], [], []>} : vector<128x4xbf16>, vector<4x288xbf16>, vector<128x288xf32> -> vector<128x288xf32>
    %29 = arith.addf %24, %28 : vector<128x288xf32>
    %c0_19 = arith.constant 0 : index
    %c0_20 = arith.constant 0 : index
    %c36 = arith.constant 36 : index
    %30 = vector.load %arg2[%c0_19, %c0_20, %c36] : memref<1x4x326xbf16, #tpu.memory_space<vmem>>, vector<1x4x288xbf16>
    %31 = vector.shape_cast %30 : vector<1x4x288xbf16> to vector<4x288xbf16>
    %32 = vector.extract_strided_slice %0 {offsets = [0, 24], sizes = [128, 4], strides = [1, 1]} : vector<128x36xbf16> to vector<128x4xbf16>
    %cst_21 = arith.constant dense<0.000000e+00> : vector<128x288xf32>
    %33 = tpu.matmul %32, %31, %cst_21 {dimension_numbers = #tpu.dot_dimension_numbers<[1], [0], [0], [1], [0, 0, 1, 1], [], []>} : vector<128x4xbf16>, vector<4x288xbf16>, vector<128x288xf32> -> vector<128x288xf32>
    %34 = arith.addf %29, %33 : vector<128x288xf32>
    %c0_22 = arith.constant 0 : index
    %c0_23 = arith.constant 0 : index
    %c37 = arith.constant 37 : index
    %35 = vector.load %arg2[%c0_22, %c0_23, %c37] : memref<1x4x326xbf16, #tpu.memory_space<vmem>>, vector<1x4x288xbf16>
    %36 = vector.shape_cast %35 : vector<1x4x288xbf16> to vector<4x288xbf16>
    %37 = vector.extract_strided_slice %0 {offsets = [0, 28], sizes = [128, 4], strides = [1, 1]} : vector<128x36xbf16> to vector<128x4xbf16>
    %cst_24 = arith.constant dense<0.000000e+00> : vector<128x288xf32>
    %38 = tpu.matmul %37, %36, %cst_24 {dimension_numbers = #tpu.dot_dimension_numbers<[1], [0], [0], [1], [0, 0, 1, 1], [], []>} : vector<128x4xbf16>, vector<4x288xbf16>, vector<128x288xf32> -> vector<128x288xf32>
    %39 = arith.addf %34, %38 : vector<128x288xf32>
    %c0_25 = arith.constant 0 : index
    %c0_26 = arith.constant 0 : index
    %c38 = arith.constant 38 : index
    %40 = vector.load %arg2[%c0_25, %c0_26, %c38] : memref<1x4x326xbf16, #tpu.memory_space<vmem>>, vector<1x4x288xbf16>
    %41 = vector.shape_cast %40 : vector<1x4x288xbf16> to vector<4x288xbf16>
    %42 = vector.extract_strided_slice %0 {offsets = [0, 32], sizes = [128, 4], strides = [1, 1]} : vector<128x36xbf16> to vector<128x4xbf16>
    %cst_27 = arith.constant dense<0.000000e+00> : vector<128x288xf32>
    %43 = tpu.matmul %42, %41, %cst_27 {dimension_numbers = #tpu.dot_dimension_numbers<[1], [0], [0], [1], [0, 0, 1, 1], [], []>} : vector<128x4xbf16>, vector<4x288xbf16>, vector<128x288xf32> -> vector<128x288xf32>
    %44 = arith.addf %39, %43 : vector<128x288xf32>
    %c0_28 = arith.constant 0 : index
    %c0_29 = arith.constant 0 : index
    %45 = vector.load %arg4[%c0_28, %c0_29] : memref<128x1xf32, #tpu.memory_space<vmem>>, vector<128x1xf32>
    %46 = vector.broadcast %45 : vector<128x1xf32> to vector<128x288xf32>
    %47 = arith.mulf %44, %46 : vector<128x288xf32>
    %c0_30 = arith.constant 0 : index
    %c0_31 = arith.constant 0 : index
    %48 = vector.load %arg5[%c0_30, %c0_31] : memref<128x1xf32, #tpu.memory_space<vmem>>, vector<128x1xf32>
    %49 = vector.broadcast %48 : vector<128x1xf32> to vector<128x288xf32>
    %50 = arith.addf %47, %49 : vector<128x288xf32>
    %cst_32 = arith.constant 0.000000e+00 : f32
    %51 = vector.broadcast %cst_32 : f32 to vector<128x288xf32>
    %52 = arith.maximumf %50, %51 : vector<128x288xf32>
    %c0_33 = arith.constant 0 : index
    %c0_34 = arith.constant 0 : index
    %c0_35 = arith.constant 0 : index
    %53 = vector.load %arg6[%c0_33, %c0_34, %c0_35] : memref<1x128x288xf32, #tpu.memory_space<vmem>>, vector<1x128x288xf32>
    %54 = vector.shape_cast %53 : vector<1x128x288xf32> to vector<128x288xf32>
    %55 = vector.shape_cast %52 : vector<128x288xf32> to vector<1x128x288xf32>
    tpu.vector_store %arg6[%c0_33, %c0_34, %c0_35], %55 {strides = array<i32>} : memref<1x128x288xf32, #tpu.memory_space<vmem>>, vector<1x128x288xf32>,
    return
  }
  func.func @transform_0(%arg0: i32, %arg1: i32) -> (i32, i32, i32) {
    %c0_i32 = arith.constant 0 : i32
    %c0_i32_0 = arith.constant 0 : i32
    %c0_i32_1 = arith.constant 0 : i32
    return %arg0, %c0_i32, %c0_i32_0 : i32, i32, i32
  }
  func.func @transform_1(%arg0: i32, %arg1: i32) -> (i32, i32) {
    %c0_i32 = arith.constant 0 : i32
    %c0_i32_0 = arith.constant 0 : i32
    return %arg1, %c0_i32 : i32, i32
  }
  func.func @transform_2(%arg0: i32, %arg1: i32) -> (i32, i32) {
    %c0_i32 = arith.constant 0 : i32
    %c0_i32_0 = arith.constant 0 : i32
    return %arg1, %c0_i32 : i32, i32
  }
  func.func @transform_3(%arg0: i32, %arg1: i32) -> (i32, i32) {
    %c0_i32 = arith.constant 0 : i32
    %c0_i32_0 = arith.constant 0 : i32
    return %arg1, %c0_i32 : i32, i32
  }
  func.func @transform_4(%arg0: i32, %arg1: i32) -> (i32, i32, i32) {
    %c0_i32 = arith.constant 0 : i32
    %c0_i32_0 = arith.constant 0 : i32
    return %arg0, %arg1, %c0_i32 : i32, i32, i32
  }
}

</mosaic_0001>

<llo_original>
// kernel: bn_conv2d_forward.1
$region0: #{bn_conv2d_forward.1}
  #allocation0 [shape = 'u32[]', space=smem, size = 0x4, offset = 0x4, fixed_abs, tag = 'smem constant byte address 0x4 - core index']
  #allocation1 [shape = 'u32[72,128]{1,0:T(1,128)}', space=vmem, size = 0x9000, scoped, tag = 'internal scratch']
  %s0 = inlined_call_operand.vmem [shape: bf16[2,4,326], index: 0, kind: input, shape index: {}]
  %s1 = inlined_call_operand.vmem [shape: bf16[128,36], index: 1, kind: input, shape index: {}]
  %s2 = inlined_call_operand.vmem [shape: f32[128,1], index: 2, kind: input, shape index: {}]
  %s3 = inlined_call_operand.vmem [shape: f32[128,1], index: 3, kind: input, shape index: {}]
  %s4 = inlined_call_operand.vmem [shape: f32[2,128,288], index: 4, kind: output, shape index: {}]
  %s5 = sld [smem:[#allocation0]]
  $region49: #{bn_conv2d_forward.1} parent=0
    _
  %s7 = ssub.s32 1, %s5
  %s8 = scalar_select 0, %s7, %s5
  loop: start=0, step=1, limit=4
  $region2: #{bn_conv2d_forward.1} parent=0 // loop_pre_header
    _
  $region3: #{bn_conv2d_forward.1} parent=0 // loop_header
    %s10 = sphi 0, %s14
    %p11 = scmp.ge.s32.totalorder %s10, 4
    %s17 = sphi 0, %s29
    %s18 = sphi 0, %s25
    %s19 = sphi 0, %s17
    %s20 = sphi 0, %s18
    %s21 = sphi 0, %s19
    %s22 = sphi 0, %s20
    %s32 = sphi 0, %s34
    %s35 = sphi 0, %s32
    %s36 = sphi 0, %s35
    %s52 = sphi 0, %s36
    %s58 = sphi 0, %s60
    %s61 = sphi 0, %s58
    %s62 = sphi 0, %s61
    %s78 = sphi 0, %s62
    %s84 = sphi 0, %s86
    %s87 = sphi 0, %s84
    %s88 = sphi 0, %s87
    %s104 = sphi 0, %s88
    %s110 = sphi 0, %s112
    %s113 = sphi 0, %s110
    %s114 = sphi 0, %s113
    %s130 = sphi 0, %s114
    %s138 = sphi 0, %s140
    %s141 = sphi 0, %s138
    %s142 = sphi 0, %s141
    %s158 = sphi 0, %s142
  $region4: #{bn_conv2d_forward.1} parent=0 // loop_header_branch
    %13 = sbr.rel (%p11) target = $region8
  $region5: #{bn_conv2d_forward.1} parent=0 // loop_body
    %s15 = ssub.s32 %s10, 1
    %s16 = ssub.s32 %s10, 2
    %s23 = sadd.s32 1, %s18
    %p24 = scmp.ge.s32.totalorder %s23, 1
    %s25 = scalar_select %p24, 0, %s23
    %s26 = sadd.s32 1, %s17
    %s27 = scalar_select %p24, %s26, %s17
    %p28 = scmp.ge.s32.totalorder %s27, 2
    %s29 = scalar_select %p28, 0, %s27
    %s30 = ssub.s32 %s17, %s29
    %p31 = scmp.eq.s32.totalorder %s30, 0
    %s33 = sadd.s32 %s32, 1
    %s34 = scalar_select %p31, %s32, %s33
    %p37 = pneg %p31
    %p38 = scmp.eq.s32.totalorder %s10, 1
    %p39 = por %p37, %p38
    %p40 = scmp.ne.s32.totalorder %s32, %s35
    %p41 = scmp.eq.s32.totalorder %s10, 0
    %p42 = por %p40, %p41
    %p43 = scmp.ne.s32.totalorder %s32, %s35
    %p44 = scmp.eq.s32.totalorder %s15, 1
    %p45 = por %p43, %p44
    %p46 = scmp.ne.s32.totalorder %s35, %s36
    %p47 = scmp.eq.s32.totalorder %s15, 0
    %p48 = por %p46, %p47
    %p49 = scmp.ne.s32.totalorder %s35, %s36
    %p50 = scmp.eq.s32.totalorder %s16, 1
    %p51 = por %p49, %p50
    %p53 = scmp.ne.s32.totalorder %s36, %s52
    %p54 = scmp.eq.s32.totalorder %s16, 0
    %p55 = por %p53, %p54
    %s56 = ssub.s32 %s18, %s25
    %p57 = scmp.eq.s32.totalorder %s56, 0
    %s59 = sadd.s32 %s58, 1
    %s60 = scalar_select %p57, %s58, %s59
    %p63 = pneg %p57
    %p64 = scmp.eq.s32.totalorder %s10, 1
    %p65 = por %p63, %p64
    %p66 = scmp.ne.s32.totalorder %s58, %s61
    %p67 = scmp.eq.s32.totalorder %s10, 0
    %p68 = por %p66, %p67
    %p69 = scmp.ne.s32.totalorder %s58, %s61
    %p70 = scmp.eq.s32.totalorder %s15, 1
    %p71 = por %p69, %p70
    %p72 = scmp.ne.s32.totalorder %s61, %s62
    %p73 = scmp.eq.s32.totalorder %s15, 0
    %p74 = por %p72, %p73
    %p75 = scmp.ne.s32.totalorder %s61, %s62
    %p76 = scmp.eq.s32.totalorder %s16, 1
    %p77 = por %p75, %p76
    %p79 = scmp.ne.s32.totalorder %s62, %s78
    %p80 = scmp.eq.s32.totalorder %s16, 0
    %p81 = por %p79, %p80
    %s82 = ssub.s32 %s18, %s25
    %p83 = scmp.eq.s32.totalorder %s82, 0
    %s85 = sadd.s32 %s84, 1
    %s86 = scalar_select %p83, %s84, %s85
    %p89 = pneg %p83
    %p90 = scmp.eq.s32.totalorder %s10, 1
    %p91 = por %p89, %p90
    %p92 = scmp.ne.s32.totalorder %s84, %s87
    %p93 = scmp.eq.s32.totalorder %s10, 0
    %p94 = por %p92, %p93
    %p95 = scmp.ne.s32.totalorder %s84, %s87
    %p96 = scmp.eq.s32.totalorder %s15, 1
    %p97 = por %p95, %p96
    %p98 = scmp.ne.s32.totalorder %s87, %s88
    %p99 = scmp.eq.s32.totalorder %s15, 0
    %p100 = por %p98, %p99
    %p101 = scmp.ne.s32.totalorder %s87, %s88
    %p102 = scmp.eq.s32.totalorder %s16, 1
    %p103 = por %p101, %p102
    %p105 = scmp.ne.s32.totalorder %s88, %s104
    %p106 = scmp.eq.s32.totalorder %s16, 0
    %p107 = por %p105, %p106
    %s108 = ssub.s32 %s18, %s25
    %p109 = scmp.eq.s32.totalorder %s108, 0
    %s111 = sadd.s32 %s110, 1
    %s112 = scalar_select %p109, %s110, %s111
    %p115 = pneg %p109
    %p116 = scmp.eq.s32.totalorder %s10, 1
    %p117 = por %p115, %p116
    %p118 = scmp.ne.s32.totalorder %s110, %s113
    %p119 = scmp.eq.s32.totalorder %s10, 0
    %p120 = por %p118, %p119
    %p121 = scmp.ne.s32.totalorder %s110, %s113
    %p122 = scmp.eq.s32.totalorder %s15, 1
    %p123 = por %p121, %p122
    %p124 = scmp.ne.s32.totalorder %s113, %s114
    %p125 = scmp.eq.s32.totalorder %s15, 0
    %p126 = por %p124, %p125
    %p127 = scmp.ne.s32.totalorder %s113, %s114
    %p128 = scmp.eq.s32.totalorder %s16, 1
    %p129 = por %p127, %p128
    %p131 = scmp.ne.s32.totalorder %s114, %s130
    %p132 = scmp.eq.s32.totalorder %s16, 0
    %p133 = por %p131, %p132
    %s134 = ssub.s32 %s17, %s29
    %s135 = ssub.s32 %s18, %s25
    %s136 = sor.u32 %s134, %s135
    %p137 = scmp.eq.s32.totalorder %s136, 0
    %s139 = sadd.s32 %s138, 1
    %s140 = scalar_select %p137, %s138, %s139
    %p143 = pneg %p137
    %p144 = scmp.eq.s32.totalorder %s10, 1
    %p145 = por %p143, %p144
    %p146 = scmp.ne.s32.totalorder %s138, %s141
    %p147 = scmp.eq.s32.totalorder %s10, 0
    %p148 = por %p146, %p147
    %p149 = scmp.ne.s32.totalorder %s138, %s141
    %p150 = scmp.eq.s32.totalorder %s15, 1
    %p151 = por %p149, %p150
    %p152 = scmp.ne.s32.totalorder %s141, %s142
    %p153 = scmp.eq.s32.totalorder %s15, 0
    %p154 = por %p152, %p153
    %p155 = scmp.ne.s32.totalorder %s141, %s142
    %p156 = scmp.eq.s32.totalorder %s16, 1
    %p157 = por %p155, %p156
    %p159 = scmp.ne.s32.totalorder %s142, %s158
    %p160 = scmp.eq.s32.totalorder %s16, 0
    %p161 = por %p159, %p160
    %p162 = scmp.le.s32.totalorder 1, %s10
    %p163 = scmp.lt.s32.totalorder %s10, 3
    %p164 = pnand %p162, %p163
    %p165 = pneg %p164
    // Predicated region
    $region9: #{bn_conv2d_forward.1} parent=5 // pred_check
      _
    $region10: #{bn_conv2d_forward.1} parent=5 // pred_check_branch
      %167 = sbr.rel (%p164) target = $region12
    $region11: #{bn_conv2d_forward.1} parent=5 // pred_region
      %s168 = ssub.s32 %s10, 1
      // Predicated region
      $region13: #{bn_conv2d_forward.1} parent=11 // pred_check
        %p169 = pneg %p74
      $region14: #{bn_conv2d_forward.1} parent=11 // pred_check_branch
        %171 = sbr.rel (%p169) target = $region16
      $region15: #{bn_conv2d_forward.1} parent=11 // pred_region
        %s172 = smul.u32 16, %s20
        %p173 = scmp.lt.s32.totalorder %s172, 15
        %s174 = scalar_select %p173, %s172, 15
        %s175 = smul.addr %s174, 4
        %s176 = scalar_lea.vmem %s1, %s175
        %s177 = smul.u32 16, %s20
      $region16: #{bn_conv2d_forward.1} parent=11 // pred_fallthru
        _
      // Predicated region
      $region17: #{bn_conv2d_forward.1} parent=11 // pred_check
        %p178 = pneg %p100
      $region18: #{bn_conv2d_forward.1} parent=11 // pred_check_branch
        %180 = sbr.rel (%p178) target = $region20
      $region19: #{bn_conv2d_forward.1} parent=11 // pred_region
        %s181 = smul.u32 16, %s20
        %p182 = scmp.lt.s32.totalorder %s181, 15
        %s183 = scalar_select %p182, %s181, 15
        %s184 = smul.addr %s183, 8
        %s185 = scalar_lea.vmem %s2, %s184
        %s186 = smul.u32 16, %s20
      $region20: #{bn_conv2d_forward.1} parent=11 // pred_fallthru
        _
      // Predicated region
      $region21: #{bn_conv2d_forward.1} parent=11 // pred_check
        %p187 = pneg %p126
      $region22: #{bn_conv2d_forward.1} parent=11 // pred_check_branch
        %189 = sbr.rel (%p187) target = $region24
      $region23: #{bn_conv2d_forward.1} parent=11 // pred_region
        %s190 = smul.u32 16, %s20
        %p191 = scmp.lt.s32.totalorder %s190, 15
        %s192 = scalar_select %p191, %s190, 15
        %s193 = smul.addr %s192, 8
        %s194 = scalar_lea.vmem %s3, %s193
        %s195 = smul.u32 16, %s20
      $region24: #{bn_conv2d_forward.1} parent=11 // pred_fallthru
        _
    $region12: #{bn_conv2d_forward.1} parent=5 // pred_fallthru
      _
    %p196 = scmp.lt.s32.totalorder %s10, 2
    // Predicated region
    $region25: #{bn_conv2d_forward.1} parent=5 // pred_check
      %p197 = pneg %p196
    $region26: #{bn_conv2d_forward.1} parent=5 // pred_check_branch
      %199 = sbr.rel (%p197) target = $region28
    $region27: #{bn_conv2d_forward.1} parent=5 // pred_region
      // Predicated region
      $region29: #{bn_conv2d_forward.1} parent=27 // pred_check
        %p200 = pneg %p42
      $region30: #{bn_conv2d_forward.1} parent=27 // pred_check_branch
        %202 = sbr.rel (%p200) target = $region32
      $region31: #{bn_conv2d_forward.1} parent=27 // pred_region
        %p203 = scmp.lt.s32.totalorder %s17, 1
        %s204 = scalar_select %p203, %s17, 1
        %s205 = smul.addr %s204, 3
        %s206 = smul.addr %s205, 2
        %s207 = scalar_lea.vmem %s0, %s206
      $region32: #{bn_conv2d_forward.1} parent=27 // pred_fallthru
        _
    $region28: #{bn_conv2d_forward.1} parent=5 // pred_fallthru
      _
    %p208 = scmp.le.s32.totalorder 1, %s10
    %p209 = scmp.lt.s32.totalorder %s10, 3
    %p210 = pnand %p208, %p209
    %p211 = pneg %p210
    // Predicated region
    $region33: #{bn_conv2d_forward.1} parent=5 // pred_check
      _
    $region34: #{bn_conv2d_forward.1} parent=5 // pred_check_branch
      %213 = sbr.rel (%p210) target = $region36
    $region35: #{bn_conv2d_forward.1} parent=5 // pred_region
      %s214 = ssub.s32 %s10, 1
      %p215 = scmp.lt.s32.totalorder %s19, 1
      %s216 = scalar_select %p215, %s19, 1
      %s217 = smul.addr %s216, 3
      %s218 = smul.addr %s217, 2
      %s219 = scalar_lea.vmem %s0, %s218
      %p220 = pneg %p48
      %p221 = pneg %p45
      %s222 = smul.u32 16, %s20
      %p223 = scmp.lt.s32.totalorder %s222, 15
      %s224 = scalar_select %p223, %s222, 15
      %s225 = smul.addr %s224, 4
      %s226 = scalar_lea.vmem %s1, %s225
      %p227 = pneg %p74
      %p228 = pneg %p71
      %s229 = smul.u32 16, %s20
      %p230 = scmp.lt.s32.totalorder %s229, 15
      %s231 = scalar_select %p230, %s229, 15
      %s232 = smul.addr %s231, 8
      %s233 = scalar_lea.vmem %s2, %s232
      %p234 = pneg %p100
      %p235 = pneg %p97
      %s236 = smul.u32 16, %s20
      %p237 = scmp.lt.s32.totalorder %s236, 15
      %s238 = scalar_select %p237, %s236, 15
      %s239 = smul.addr %s238, 8
      %s240 = scalar_lea.vmem %s3, %s239
      %p241 = pneg %p126
      %p242 = pneg %p123
      %p243 = pneg %p154
      %p244 = pneg %p151
      %s245 = smul.u32 16, %s20
      %p246 = scmp.lt.s32.totalorder %s19, 1
      %s247 = scalar_select %p246, %s19, 1
      %p248 = scmp.lt.s32.totalorder %s245, 15
      %s249 = scalar_select %p248, %s245, 15
      %s250 = smul.addr %s249, 3
      %s251 = smul.addr %s247, 48
      %s252 = sadd.s32 %s250, %s251
      %s253 = smul.addr %s252, 8
      %s254 = scalar_lea.vmem %s4, %s253
      %p255 = scmp.lt.s32.totalorder %s19, 1
      %s256 = scalar_select %p255, %s19, 1
      %s257 = smul.addr %s256, 3
      %s258 = smul.addr %s257, 2
      %s259 = scalar_lea.vmem %s0, %s258
      %s260 = smul.u32 16, %s20
      %p261 = scmp.lt.s32.totalorder %s260, 15
      %s262 = scalar_select %p261, %s260, 15
      %s263 = smul.addr %s262, 4
      %s264 = scalar_lea.vmem %s1, %s263
      %s265 = smul.u32 16, %s20
      %s266 = smul.u32 16, %s20
      %p267 = scmp.lt.s32.totalorder %s266, 15
      %s268 = scalar_select %p267, %s266, 15
      %s269 = smul.addr %s268, 8
      %s270 = scalar_lea.vmem %s2, %s269
      %s271 = smul.u32 16, %s20
      %s272 = smul.u32 16, %s20
      %p273 = scmp.lt.s32.totalorder %s272, 15
      %s274 = scalar_select %p273, %s272, 15
      %s275 = smul.addr %s274, 8
      %s276 = scalar_lea.vmem %s3, %s275
      %s277 = smul.u32 16, %s20
      %s278 = smul.u32 16, %s20
      %p279 = scmp.lt.s32.totalorder %s19, 1
      %s280 = scalar_select %p279, %s19, 1
      %p281 = scmp.lt.s32.totalorder %s278, 15
      %s282 = scalar_select %p281, %s278, 15
      %s283 = smul.addr %s282, 3
      %s284 = smul.addr %s280, 48
      %s285 = sadd.s32 %s283, %s284
      %s286 = smul.addr %s285, 8
      %s287 = scalar_lea.vmem %s4, %s286
      %s288 = smul.u32 16, %s20
      %v290 = vld [vmem:[%s264] sm:$0xf]
      %v291 = vld [vmem:[%s264 + $0x4] sm:$0xf]
      %v292 = vld [vmem:[%s264 + $0x8] sm:$0xf]
      %v293 = vld [vmem:[%s264 + $0xc] sm:$0xf]
      %v294 = vld [vmem:[%s264 + $0x10] sm:$0xf]
      %v295 = vld [vmem:[%s264 + $0x14] sm:$0xf]
      %v296 = vld [vmem:[%s264 + $0x18] sm:$0xf]
      %v297 = vld [vmem:[%s264 + $0x1c] sm:$0xf]
      %v298 = vld [vmem:[%s264 + $0x20] sm:$0xf]
      %v299 = vld [vmem:[%s264 + $0x24] sm:$0xf]
      %v300 = vld [vmem:[%s264 + $0x28] sm:$0xf]
      %v301 = vld [vmem:[%s264 + $0x2c] sm:$0xf]
      %v302 = vld [vmem:[%s264 + $0x30] sm:$0xf]
      %v303 = vld [vmem:[%s264 + $0x34] sm:$0xf]
      %v304 = vld [vmem:[%s264 + $0x38] sm:$0xf]
      %v305 = vld [vmem:[%s264 + $0x3c] sm:$0xf]
      %v306 = vld [vmem:[%s259] sm:$0x3f]
      %v323 = vunpack.c.l.b16 %v290
      %v324 = vunpack.c.l.b16 %v291
      %v325 = vunpack.c.l.b16 %v292
      %v326 = vunpack.c.l.b16 %v293
      %v327 = vunpack.c.l.b16 %v294
      %v328 = vunpack.c.l.b16 %v295
      %v329 = vunpack.c.l.b16 %v296
      %v330 = vunpack.c.l.b16 %v297
      %v331 = vunpack.c.l.b16 %v298
      %v332 = vunpack.c.l.b16 %v299
      %v333 = vunpack.c.l.b16 %v300
      %v334 = vunpack.c.l.b16 %v301
      %v335 = vunpack.c.l.b16 %v302
      %v336 = vunpack.c.l.b16 %v303
      %v337 = vunpack.c.l.b16 %v304
      %v338 = vunpack.c.l.b16 %v305
      %v339 = vpack.c.b16 %v324, %v323
      %v340 = vpack.c.b16 %v326, %v325
      %v341 = vpack.c.b16 %v328, %v327
      %v342 = vpack.c.b16 %v330, %v329
      %v343 = vpack.c.b16 %v332, %v331
      %v344 = vpack.c.b16 %v334, %v333
      %v345 = vpack.c.b16 %v336, %v335
      %v346 = vpack.c.b16 %v338, %v337
      %347 = vrot.lane.b32.xlu0 %v339, 124
      %v348 = vpop.permute.xlu0 %347
      %349 = vrot.lane.b32.xlu0 %v340, 124
      %v350 = vpop.permute.xlu0 %349
      %351 = vrot.lane.b32.xlu0 %v341, 124
      %v352 = vpop.permute.xlu0 %351
      %353 = vrot.lane.b32.xlu0 %v342, 124
      %v354 = vpop.permute.xlu0 %353
      %355 = vrot.lane.b32.xlu0 %v343, 124
      %v356 = vpop.permute.xlu0 %355
      %357 = vrot.lane.b32.xlu0 %v344, 124
      %v358 = vpop.permute.xlu0 %357
      %359 = vrot.lane.b32.xlu0 %v345, 124
      %v360 = vpop.permute.xlu0 %359
      %361 = vrot.lane.b32.xlu0 %v346, 124
      %v362 = vpop.permute.xlu0 %361
      %364 = vst [vmem:[#allocation1] ss:$4 sm:$0xff] %v306
      %v365 = vld.sshfl [vmem:[#allocation1] sm:$0xff pattern:$0x73625140]
      %v367 = vld.sshfl [vmem:[#allocation1 + $0x8] sm:$0xff pattern:$0x73625140]
      %v369 = vld.sshfl [vmem:[#allocation1 + $0x10] sm:$0xff pattern:$0x73625140]
      %371 = vrot.lane.b32.xlu0 %v365, 127
      %v372 = vpop.permute.xlu0 %371
      %373 = vrot.lane.b32.xlu0 %v367, 127
      %v374 = vpop.permute.xlu0 %373
      %375 = vrot.lane.b32.xlu0 %v369, 127
      %v376 = vpop.permute.xlu0 %375
      %vm377 = vcmask 1039360
      %v378 = vsel %vm377, %v372, %v374
      %v379 = vsel %vm377, %v374, %v376
      %vm380 = vcmask 31744
      %v382 = vsel %vm380, %v348, 0
      %v385 = vsel %vm380, %v350, 0
      %v388 = vsel %vm380, %v352, 0
      %v391 = vsel %vm380, %v354, 0
      %v394 = vsel %vm380, %v356, 0
      %v397 = vsel %vm380, %v358, 0
      %v400 = vsel %vm380, %v360, 0
      %v403 = vsel %vm380, %v362, 0
      %vm405 = vcmask 1041408
      %v407 = vsel %vm405, %v378, 0
      %v410 = vsel %vm405, %v379, 0
      %v413 = vsel %vm405, %v376, 0
      %415 = vmatpush.bf16.msra.mxu0 0
      %416 = vmatpush.bf16.msra.mxu0 0
      %417 = vmatpush.bf16.msra.mxu0 0
      %418 = vmatpush.bf16.msra.mxu0 0
      %419 = vmatpush.bf16.msra.mxu0 0
      %420 = vmatpush.bf16.msra.mxu0 0
      %421 = vmatpush.bf16.msra.mxu0 0
      %422 = vmatpush.bf16.msra.mxu0 %v407
      %423 = vmatmul.bf16.gmra.mxu0 %v382
      %v424 = vpop.f32.mrf.mxu0
      %v425 = vadd.f32 0.0, %v424
      %v426 = vpop.f32.mrf.mxu0
      %v427 = vadd.f32 0.0, %v426
      %428 = vmatmul.bf16.gmra.mxu0 %v385
      %v429 = vpop.f32.mrf.mxu0
      %v430 = vadd.f32 0.0, %v429
      %v431 = vpop.f32.mrf.mxu0
      %v432 = vadd.f32 0.0, %v431
      %433 = vmatmul.bf16.gmra.mxu0 %v388
      %v434 = vpop.f32.mrf.mxu0
      %v435 = vadd.f32 0.0, %v434
      %v436 = vpop.f32.mrf.mxu0
      %v437 = vadd.f32 0.0, %v436
      %438 = vmatmul.bf16.gmra.mxu0 %v391
      %v439 = vpop.f32.mrf.mxu0
      %v440 = vadd.f32 0.0, %v439
      %v441 = vpop.f32.mrf.mxu0
      %v442 = vadd.f32 0.0, %v441
      %443 = vmatmul.bf16.gmra.mxu0 %v394
      %v444 = vpop.f32.mrf.mxu0
      %v445 = vadd.f32 0.0, %v444
      %v446 = vpop.f32.mrf.mxu0
      %v447 = vadd.f32 0.0, %v446
      %448 = vmatmul.bf16.gmra.mxu0 %v397
      %v449 = vpop.f32.mrf.mxu0
      %v450 = vadd.f32 0.0, %v449
      %v451 = vpop.f32.mrf.mxu0
      %v452 = vadd.f32 0.0, %v451
      %453 = vmatmul.bf16.gmra.mxu0 %v400
      %v454 = vpop.f32.mrf.mxu0
      %v455 = vadd.f32 0.0, %v454
      %v456 = vpop.f32.mrf.mxu0
      %v457 = vadd.f32 0.0, %v456
      %458 = vmatmul.bf16.gmra.mxu0 %v403
      %v459 = vpop.f32.mrf.mxu0
      %v460 = vadd.f32 0.0, %v459
      %v461 = vpop.f32.mrf.mxu0
      %v462 = vadd.f32 0.0, %v461
      %463 = vdwg.mxu0
      %464 = vmatpush.bf16.msra.mxu0 0
      %465 = vmatpush.bf16.msra.mxu0 0
      %466 = vmatpush.bf16.msra.mxu0 0
      %467 = vmatpush.bf16.msra.mxu0 0
      %468 = vmatpush.bf16.msra.mxu0 0
      %469 = vmatpush.bf16.msra.mxu0 0
      %470 = vmatpush.bf16.msra.mxu0 0
      %471 = vmatpush.bf16.msra.mxu0 %v410
      %472 = vmatmul.bf16.gmra.mxu0 %v382
      %v473 = vpop.f32.mrf.mxu0
      %v474 = vadd.f32 0.0, %v473
      %v475 = vpop.f32.mrf.mxu0
      %v476 = vadd.f32 0.0, %v475
      %477 = vmatmul.bf16.gmra.mxu0 %v385
      %v478 = vpop.f32.mrf.mxu0
      %v479 = vadd.f32 0.0, %v478
      %v480 = vpop.f32.mrf.mxu0
      %v481 = vadd.f32 0.0, %v480
      %482 = vmatmul.bf16.gmra.mxu0 %v388
      %v483 = vpop.f32.mrf.mxu0
      %v484 = vadd.f32 0.0, %v483
      %v485 = vpop.f32.mrf.mxu0
      %v486 = vadd.f32 0.0, %v485
      %487 = vmatmul.bf16.gmra.mxu0 %v391
      %v488 = vpop.f32.mrf.mxu0
      %v489 = vadd.f32 0.0, %v488
      %v490 = vpop.f32.mrf.mxu0
      %v491 = vadd.f32 0.0, %v490
      %492 = vmatmul.bf16.gmra.mxu0 %v394
      %v493 = vpop.f32.mrf.mxu0
      %v494 = vadd.f32 0.0, %v493
      %v495 = vpop.f32.mrf.mxu0
      %v496 = vadd.f32 0.0, %v495
      %497 = vmatmul.bf16.gmra.mxu0 %v397
      %v498 = vpop.f32.mrf.mxu0
      %v499 = vadd.f32 0.0, %v498
      %v500 = vpop.f32.mrf.mxu0
      %v501 = vadd.f32 0.0, %v500
      %502 = vmatmul.bf16.gmra.mxu0 %v400
      %v503 = vpop.f32.mrf.mxu0
      %v504 = vadd.f32 0.0, %v503
      %v505 = vpop.f32.mrf.mxu0
      %v506 = vadd.f32 0.0, %v505
      %507 = vmatmul.bf16.gmra.mxu0 %v403
      %v508 = vpop.f32.mrf.mxu0
      %v509 = vadd.f32 0.0, %v508
      %v510 = vpop.f32.mrf.mxu0
      %v511 = vadd.f32 0.0, %v510
      %512 = vdwg.mxu0
      %513 = vmatpush.bf16.msra.mxu0 0
      %514 = vmatpush.bf16.msra.mxu0 0
      %515 = vmatpush.bf16.msra.mxu0 0
      %516 = vmatpush.bf16.msra.mxu0 0
      %517 = vmatpush.bf16.msra.mxu0 0
      %518 = vmatpush.bf16.msra.mxu0 0
      %519 = vmatpush.bf16.msra.mxu0 0
      %520 = vmatpush.bf16.msra.mxu0 %v413
      %521 = vmatmul.bf16.gmra.mxu0 %v382
      %v522 = vpop.f32.mrf.mxu0
      %v523 = vadd.f32 0.0, %v522
      %v524 = vpop.f32.mrf.mxu0
      %v525 = vadd.f32 0.0, %v524
      %526 = vmatmul.bf16.gmra.mxu0 %v385
      %v527 = vpop.f32.mrf.mxu0
      %v528 = vadd.f32 0.0, %v527
      %v529 = vpop.f32.mrf.mxu0
      %v530 = vadd.f32 0.0, %v529
      %531 = vmatmul.bf16.gmra.mxu0 %v388
      %v532 = vpop.f32.mrf.mxu0
      %v533 = vadd.f32 0.0, %v532
      %v534 = vpop.f32.mrf.mxu0
      %v535 = vadd.f32 0.0, %v534
      %536 = vmatmul.bf16.gmra.mxu0 %v391
      %v537 = vpop.f32.mrf.mxu0
      %v538 = vadd.f32 0.0, %v537
      %v539 = vpop.f32.mrf.mxu0
      %v540 = vadd.f32 0.0, %v539
      %541 = vmatmul.bf16.gmra.mxu0 %v394
      %v542 = vpop.f32.mrf.mxu0
      %v543 = vadd.f32 0.0, %v542
      %v544 = vpop.f32.mrf.mxu0
      %v545 = vadd.f32 0.0, %v544
      %546 = vmatmul.bf16.gmra.mxu0 %v397
      %v547 = vpop.f32.mrf.mxu0
      %v548 = vadd.f32 0.0, %v547
      %v549 = vpop.f32.mrf.mxu0
      %v550 = vadd.f32 0.0, %v549
      %551 = vmatmul.bf16.gmra.mxu0 %v400
      %v552 = vpop.f32.mrf.mxu0
      %v553 = vadd.f32 0.0, %v552
      %v554 = vpop.f32.mrf.mxu0
      %v555 = vadd.f32 0.0, %v554
      %556 = vmatmul.bf16.gmra.mxu0 %v403
      %v557 = vpop.f32.mrf.mxu0
      %v558 = vadd.f32 0.0, %v557
      %v559 = vpop.f32.mrf.mxu0
      %v560 = vadd.f32 0.0, %v559
      %561 = vdwg.mxu0
      %562 = vst [vmem:[#allocation1] ss:$4 sm:$0xff] %v306
      %v563 = vld.sshfl [vmem:[#allocation1] sm:$0xff pattern:$0x73625140]
      %v564 = vld.sshfl [vmem:[#allocation1 + $0x8] sm:$0xff pattern:$0x73625140]
      %v565 = vld.sshfl [vmem:[#allocation1 + $0x10] sm:$0xff pattern:$0x73625140]
      %v567 = vsel %vm380, %v339, 0
      %v570 = vsel %vm380, %v340, 0
      %v573 = vsel %vm380, %v341, 0
      %v576 = vsel %vm380, %v342, 0
      %v579 = vsel %vm380, %v343, 0
      %v582 = vsel %vm380, %v344, 0
      %v585 = vsel %vm380, %v345, 0
      %v588 = vsel %vm380, %v346, 0
      %v590 = vsel %vm405, %v563, 0
      %v592 = vsel %vm405, %v564, 0
      %v594 = vsel %vm405, %v565, 0
      %596 = vmatpush.bf16.msra.mxu0 0
      %597 = vmatpush.bf16.msra.mxu0 0
      %598 = vmatpush.bf16.msra.mxu0 0
      %599 = vmatpush.bf16.msra.mxu0 0
      %600 = vmatpush.bf16.msra.mxu0 0
      %601 = vmatpush.bf16.msra.mxu0 0
      %602 = vmatpush.bf16.msra.mxu0 0
      %603 = vmatpush.bf16.msra.mxu0 %v590
      %604 = vmatmul.bf16.gmra.mxu0 %v567
      %v605 = vpop.f32.mrf.mxu0
      %v606 = vadd.f32 %v425, %v605
      %v607 = vpop.f32.mrf.mxu0
      %v608 = vadd.f32 %v427, %v607
      %609 = vmatmul.bf16.gmra.mxu0 %v570
      %v610 = vpop.f32.mrf.mxu0
      %v611 = vadd.f32 %v430, %v610
      %v612 = vpop.f32.mrf.mxu0
      %v613 = vadd.f32 %v432, %v612
      %614 = vmatmul.bf16.gmra.mxu0 %v573
      %v615 = vpop.f32.mrf.mxu0
      %v616 = vadd.f32 %v435, %v615
      %v617 = vpop.f32.mrf.mxu0
      %v618 = vadd.f32 %v437, %v617
      %619 = vmatmul.bf16.gmra.mxu0 %v576
      %v620 = vpop.f32.mrf.mxu0
      %v621 = vadd.f32 %v440, %v620
      %v622 = vpop.f32.mrf.mxu0
      %v623 = vadd.f32 %v442, %v622
      %624 = vmatmul.bf16.gmra.mxu0 %v579
      %v625 = vpop.f32.mrf.mxu0
      %v626 = vadd.f32 %v445, %v625
      %v627 = vpop.f32.mrf.mxu0
      %v628 = vadd.f32 %v447, %v627
      %629 = vmatmul.bf16.gmra.mxu0 %v582
      %v630 = vpop.f32.mrf.mxu0
      %v631 = vadd.f32 %v450, %v630
      %v632 = vpop.f32.mrf.mxu0
      %v633 = vadd.f32 %v452, %v632
      %634 = vmatmul.bf16.gmra.mxu0 %v585
      %v635 = vpop.f32.mrf.mxu0
      %v636 = vadd.f32 %v455, %v635
      %v637 = vpop.f32.mrf.mxu0
      %v638 = vadd.f32 %v457, %v637
      %639 = vmatmul.bf16.gmra.mxu0 %v588
      %v640 = vpop.f32.mrf.mxu0
      %v641 = vadd.f32 %v460, %v640
      %v642 = vpop.f32.mrf.mxu0
      %v643 = vadd.f32 %v462, %v642
      %644 = vdwg.mxu0
      %645 = vmatpush.bf16.msra.mxu0 0
      %646 = vmatpush.bf16.msra.mxu0 0
      %647 = vmatpush.bf16.msra.mxu0 0
      %648 = vmatpush.bf16.msra.mxu0 0
      %649 = vmatpush.bf16.msra.mxu0 0
      %650 = vmatpush.bf16.msra.mxu0 0
      %651 = vmatpush.bf16.msra.mxu0 0
      %652 = vmatpush.bf16.msra.mxu0 %v592
      %653 = vmatmul.bf16.gmra.mxu0 %v567
      %v654 = vpop.f32.mrf.mxu0
      %v655 = vadd.f32 %v474, %v654
      %v656 = vpop.f32.mrf.mxu0
      %v657 = vadd.f32 %v476, %v656
      %658 = vmatmul.bf16.gmra.mxu0 %v570
      %v659 = vpop.f32.mrf.mxu0
      %v660 = vadd.f32 %v479, %v659
      %v661 = vpop.f32.mrf.mxu0
      %v662 = vadd.f32 %v481, %v661
      %663 = vmatmul.bf16.gmra.mxu0 %v573
      %v664 = vpop.f32.mrf.mxu0
      %v665 = vadd.f32 %v484, %v664
      %v666 = vpop.f32.mrf.mxu0
      %v667 = vadd.f32 %v486, %v666
      %668 = vmatmul.bf16.gmra.mxu0 %v576
      %v669 = vpop.f32.mrf.mxu0
      %v670 = vadd.f32 %v489, %v669
      %v671 = vpop.f32.mrf.mxu0
      %v672 = vadd.f32 %v491, %v671
      %673 = vmatmul.bf16.gmra.mxu0 %v579
      %v674 = vpop.f32.mrf.mxu0
      %v675 = vadd.f32 %v494, %v674
      %v676 = vpop.f32.mrf.mxu0
      %v677 = vadd.f32 %v496, %v676
      %678 = vmatmul.bf16.gmra.mxu0 %v582
      %v679 = vpop.f32.mrf.mxu0
      %v680 = vadd.f32 %v499, %v679
      %v681 = vpop.f32.mrf.mxu0
      %v682 = vadd.f32 %v501, %v681
      %683 = vmatmul.bf16.gmra.mxu0 %v585
      %v684 = vpop.f32.mrf.mxu0
      %v685 = vadd.f32 %v504, %v684
      %v686 = vpop.f32.mrf.mxu0
      %v687 = vadd.f32 %v506, %v686
      %688 = vmatmul.bf16.gmra.mxu0 %v588
      %v689 = vpop.f32.mrf.mxu0
      %v690 = vadd.f32 %v509, %v689
      %v691 = vpop.f32.mrf.mxu0
      %v692 = vadd.f32 %v511, %v691
      %693 = vdwg.mxu0
      %694 = vmatpush.bf16.msra.mxu0 0
      %695 = vmatpush.bf16.msra.mxu0 0
      %696 = vmatpush.bf16.msra.mxu0 0
      %697 = vmatpush.bf16.msra.mxu0 0
      %698 = vmatpush.bf16.msra.mxu0 0
      %699 = vmatpush.bf16.msra.mxu0 0
      %700 = vmatpush.bf16.msra.mxu0 0
      %701 = vmatpush.bf16.msra.mxu0 %v594
      %702 = vmatmul.bf16.gmra.mxu0 %v567
      %v703 = vpop.f32.mrf.mxu0
      %v704 = vadd.f32 %v523, %v703
      %v705 = vpop.f32.mrf.mxu0
      %v706 = vadd.f32 %v525, %v705
      %707 = vmatmul.bf16.gmra.mxu0 %v570
      %v708 = vpop.f32.mrf.mxu0
      %v709 = vadd.f32 %v528, %v708
      %v710 = vpop.f32.mrf.mxu0
      %v711 = vadd.f32 %v530, %v710
      %712 = vmatmul.bf16.gmra.mxu0 %v573
      %v713 = vpop.f32.mrf.mxu0
      %v714 = vadd.f32 %v533, %v713
      %v715 = vpop.f32.mrf.mxu0
      %v716 = vadd.f32 %v535, %v715
      %717 = vmatmul.bf16.gmra.mxu0 %v576
      %v718 = vpop.f32.mrf.mxu0
      %v719 = vadd.f32 %v538, %v718
      %v720 = vpop.f32.mrf.mxu0
      %v721 = vadd.f32 %v540, %v720
      %722 = vmatmul.bf16.gmra.mxu0 %v579
      %v723 = vpop.f32.mrf.mxu0
      %v724 = vadd.f32 %v543, %v723
      %v725 = vpop.f32.mrf.mxu0
      %v726 = vadd.f32 %v545, %v725
      %727 = vmatmul.bf16.gmra.mxu0 %v582
      %v728 = vpop.f32.mrf.mxu0
      %v729 = vadd.f32 %v548, %v728
      %v730 = vpop.f32.mrf.mxu0
      %v731 = vadd.f32 %v550, %v730
      %732 = vmatmul.bf16.gmra.mxu0 %v585
      %v733 = vpop.f32.mrf.mxu0
      %v734 = vadd.f32 %v553, %v733
      %v735 = vpop.f32.mrf.mxu0
      %v736 = vadd.f32 %v555, %v735
      %737 = vmatmul.bf16.gmra.mxu0 %v588
      %v738 = vpop.f32.mrf.mxu0
      %v739 = vadd.f32 %v558, %v738
      %v740 = vpop.f32.mrf.mxu0
      %v741 = vadd.f32 %v560, %v740
      %742 = vdwg.mxu0
      %v743 = vld [vmem:[%s259] sm:$0x3f]
      %744 = vrot.lane.b32.xlu0 %v339, 120
      %v745 = vpop.permute.xlu0 %744
      %746 = vrot.lane.b32.xlu0 %v340, 120
      %v747 = vpop.permute.xlu0 %746
      %748 = vrot.lane.b32.xlu0 %v341, 120
      %v749 = vpop.permute.xlu0 %748
      %750 = vrot.lane.b32.xlu0 %v342, 120
      %v751 = vpop.permute.xlu0 %750
      %752 = vrot.lane.b32.xlu0 %v343, 120
      %v753 = vpop.permute.xlu0 %752
      %754 = vrot.lane.b32.xlu0 %v344, 120
      %v755 = vpop.permute.xlu0 %754
      %756 = vrot.lane.b32.xlu0 %v345, 120
      %v757 = vpop.permute.xlu0 %756
      %758 = vrot.lane.b32.xlu0 %v346, 120
      %v759 = vpop.permute.xlu0 %758
      %761 = vst [vmem:[#allocation1] ss:$4 sm:$0xff] %v743
      %v762 = vld.sshfl [vmem:[#allocation1] sm:$0xff pattern:$0x73625140]
      %v764 = vld.sshfl [vmem:[#allocation1 + $0x8] sm:$0xff pattern:$0x73625140]
      %v766 = vld.sshfl [vmem:[#allocation1 + $0x10] sm:$0xff pattern:$0x73625140]
      %768 = vrot.lane.b32.xlu0 %v762, 126
      %v769 = vpop.permute.xlu0 %768
      %770 = vrot.lane.b32.xlu0 %v764, 126
      %v771 = vpop.permute.xlu0 %770
      %772 = vrot.lane.b32.xlu0 %v766, 126
      %v773 = vpop.permute.xlu0 %772
      %vm774 = vcmask 1031168
      %v775 = vsel %vm774, %v769, %v771
      %v776 = vsel %vm774, %v771, %v773
      %v778 = vsel %vm380, %v745, 0
      %v781 = vsel %vm380, %v747, 0
      %v784 = vsel %vm380, %v749, 0
      %v787 = vsel %vm380, %v751, 0
      %v790 = vsel %vm380, %v753, 0
      %v793 = vsel %vm380, %v755, 0
      %v796 = vsel %vm380, %v757, 0
      %v799 = vsel %vm380, %v759, 0
      %v802 = vsel %vm405, %v775, 0
      %v805 = vsel %vm405, %v776, 0
      %v808 = vsel %vm405, %v773, 0
      %810 = vmatpush.bf16.msra.mxu0 0
      %811 = vmatpush.bf16.msra.mxu0 0
      %812 = vmatpush.bf16.msra.mxu0 0
      %813 = vmatpush.bf16.msra.mxu0 0
      %814 = vmatpush.bf16.msra.mxu0 0
      %815 = vmatpush.bf16.msra.mxu0 0
      %816 = vmatpush.bf16.msra.mxu0 0
      %817 = vmatpush.bf16.msra.mxu0 %v802
      %818 = vmatmul.bf16.gmra.mxu0 %v778
      %v819 = vpop.f32.mrf.mxu0
      %v820 = vadd.f32 0.0, %v819
      %v821 = vpop.f32.mrf.mxu0
      %v822 = vadd.f32 0.0, %v821
      %823 = vmatmul.bf16.gmra.mxu0 %v781
      %v824 = vpop.f32.mrf.mxu0
      %v825 = vadd.f32 0.0, %v824
      %v826 = vpop.f32.mrf.mxu0
      %v827 = vadd.f32 0.0, %v826
      %828 = vmatmul.bf16.gmra.mxu0 %v784
      %v829 = vpop.f32.mrf.mxu0
      %v830 = vadd.f32 0.0, %v829
      %v831 = vpop.f32.mrf.mxu0
      %v832 = vadd.f32 0.0, %v831
      %833 = vmatmul.bf16.gmra.mxu0 %v787
      %v834 = vpop.f32.mrf.mxu0
      %v835 = vadd.f32 0.0, %v834
      %v836 = vpop.f32.mrf.mxu0
      %v837 = vadd.f32 0.0, %v836
      %838 = vmatmul.bf16.gmra.mxu0 %v790
      %v839 = vpop.f32.mrf.mxu0
      %v840 = vadd.f32 0.0, %v839
      %v841 = vpop.f32.mrf.mxu0
      %v842 = vadd.f32 0.0, %v841
      %843 = vmatmul.bf16.gmra.mxu0 %v793
      %v844 = vpop.f32.mrf.mxu0
      %v845 = vadd.f32 0.0, %v844
      %v846 = vpop.f32.mrf.mxu0
      %v847 = vadd.f32 0.0, %v846
      %848 = vmatmul.bf16.gmra.mxu0 %v796
      %v849 = vpop.f32.mrf.mxu0
      %v850 = vadd.f32 0.0, %v849
      %v851 = vpop.f32.mrf.mxu0
      %v852 = vadd.f32 0.0, %v851
      %853 = vmatmul.bf16.gmra.mxu0 %v799
      %v854 = vpop.f32.mrf.mxu0
      %v855 = vadd.f32 0.0, %v854
      %v856 = vpop.f32.mrf.mxu0
      %v857 = vadd.f32 0.0, %v856
      %858 = vdwg.mxu0
      %859 = vmatpush.bf16.msra.mxu0 0
      %860 = vmatpush.bf16.msra.mxu0 0
      %861 = vmatpush.bf16.msra.mxu0 0
      %862 = vmatpush.bf16.msra.mxu0 0
      %863 = vmatpush.bf16.msra.mxu0 0
      %864 = vmatpush.bf16.msra.mxu0 0
      %865 = vmatpush.bf16.msra.mxu0 0
      %866 = vmatpush.bf16.msra.mxu0 %v805
      %867 = vmatmul.bf16.gmra.mxu0 %v778
      %v868 = vpop.f32.mrf.mxu0
      %v869 = vadd.f32 0.0, %v868
      %v870 = vpop.f32.mrf.mxu0
      %v871 = vadd.f32 0.0, %v870
      %872 = vmatmul.bf16.gmra.mxu0 %v781
      %v873 = vpop.f32.mrf.mxu0
      %v874 = vadd.f32 0.0, %v873
      %v875 = vpop.f32.mrf.mxu0
      %v876 = vadd.f32 0.0, %v875
      %877 = vmatmul.bf16.gmra.mxu0 %v784
      %v878 = vpop.f32.mrf.mxu0
      %v879 = vadd.f32 0.0, %v878
      %v880 = vpop.f32.mrf.mxu0
      %v881 = vadd.f32 0.0, %v880
      %882 = vmatmul.bf16.gmra.mxu0 %v787
      %v883 = vpop.f32.mrf.mxu0
      %v884 = vadd.f32 0.0, %v883
      %v885 = vpop.f32.mrf.mxu0
      %v886 = vadd.f32 0.0, %v885
      %887 = vmatmul.bf16.gmra.mxu0 %v790
      %v888 = vpop.f32.mrf.mxu0
      %v889 = vadd.f32 0.0, %v888
      %v890 = vpop.f32.mrf.mxu0
      %v891 = vadd.f32 0.0, %v890
      %892 = vmatmul.bf16.gmra.mxu0 %v793
      %v893 = vpop.f32.mrf.mxu0
      %v894 = vadd.f32 0.0, %v893
      %v895 = vpop.f32.mrf.mxu0
      %v896 = vadd.f32 0.0, %v895
      %897 = vmatmul.bf16.gmra.mxu0 %v796
      %v898 = vpop.f32.mrf.mxu0
      %v899 = vadd.f32 0.0, %v898
      %v900 = vpop.f32.mrf.mxu0
      %v901 = vadd.f32 0.0, %v900
      %902 = vmatmul.bf16.gmra.mxu0 %v799
      %v903 = vpop.f32.mrf.mxu0
      %v904 = vadd.f32 0.0, %v903
      %v905 = vpop.f32.mrf.mxu0
      %v906 = vadd.f32 0.0, %v905
      %907 = vdwg.mxu0
      %908 = vmatpush.bf16.msra.mxu0 0
      %909 = vmatpush.bf16.msra.mxu0 0
      %910 = vmatpush.bf16.msra.mxu0 0
      %911 = vmatpush.bf16.msra.mxu0 0
      %912 = vmatpush.bf16.msra.mxu0 0
      %913 = vmatpush.bf16.msra.mxu0 0
      %914 = vmatpush.bf16.msra.mxu0 0
      %915 = vmatpush.bf16.msra.mxu0 %v808
      %916 = vmatmul.bf16.gmra.mxu0 %v778
      %v917 = vpop.f32.mrf.mxu0
      %v918 = vadd.f32 0.0, %v917
      %v919 = vpop.f32.mrf.mxu0
      %v920 = vadd.f32 0.0, %v919
      %921 = vmatmul.bf16.gmra.mxu0 %v781
      %v922 = vpop.f32.mrf.mxu0
      %v923 = vadd.f32 0.0, %v922
      %v924 = vpop.f32.mrf.mxu0
      %v925 = vadd.f32 0.0, %v924
      %926 = vmatmul.bf16.gmra.mxu0 %v784
      %v927 = vpop.f32.mrf.mxu0
      %v928 = vadd.f32 0.0, %v927
      %v929 = vpop.f32.mrf.mxu0
      %v930 = vadd.f32 0.0, %v929
      %931 = vmatmul.bf16.gmra.mxu0 %v787
      %v932 = vpop.f32.mrf.mxu0
      %v933 = vadd.f32 0.0, %v932
      %v934 = vpop.f32.mrf.mxu0
      %v935 = vadd.f32 0.0, %v934
      %936 = vmatmul.bf16.gmra.mxu0 %v790
      %v937 = vpop.f32.mrf.mxu0
      %v938 = vadd.f32 0.0, %v937
      %v939 = vpop.f32.mrf.mxu0
      %v940 = vadd.f32 0.0, %v939
      %941 = vmatmul.bf16.gmra.mxu0 %v793
      %v942 = vpop.f32.mrf.mxu0
      %v943 = vadd.f32 0.0, %v942
      %v944 = vpop.f32.mrf.mxu0
      %v945 = vadd.f32 0.0, %v944
      %946 = vmatmul.bf16.gmra.mxu0 %v796
      %v947 = vpop.f32.mrf.mxu0
      %v948 = vadd.f32 0.0, %v947
      %v949 = vpop.f32.mrf.mxu0
      %v950 = vadd.f32 0.0, %v949
      %951 = vmatmul.bf16.gmra.mxu0 %v799
      %v952 = vpop.f32.mrf.mxu0
      %v953 = vadd.f32 0.0, %v952
      %v954 = vpop.f32.mrf.mxu0
      %v955 = vadd.f32 0.0, %v954
      %956 = vdwg.mxu0
      %v957 = vadd.f32 %v606, %v820
      %v958 = vadd.f32 %v655, %v869
      %v959 = vadd.f32 %v704, %v918
      %v960 = vadd.f32 %v608, %v822
      %v961 = vadd.f32 %v657, %v871
      %v962 = vadd.f32 %v706, %v920
      %v963 = vadd.f32 %v611, %v825
      %v964 = vadd.f32 %v660, %v874
      %v965 = vadd.f32 %v709, %v923
      %v966 = vadd.f32 %v613, %v827
      %v967 = vadd.f32 %v662, %v876
      %v968 = vadd.f32 %v711, %v925
      %v969 = vadd.f32 %v616, %v830
      %v970 = vadd.f32 %v665, %v879
      %v971 = vadd.f32 %v714, %v928
      %v972 = vadd.f32 %v618, %v832
      %v973 = vadd.f32 %v667, %v881
      %v974 = vadd.f32 %v716, %v930
      %v975 = vadd.f32 %v621, %v835
      %v976 = vadd.f32 %v670, %v884
      %v977 = vadd.f32 %v719, %v933
      %v978 = vadd.f32 %v623, %v837
      %v979 = vadd.f32 %v672, %v886
      %v980 = vadd.f32 %v721, %v935
      %v981 = vadd.f32 %v626, %v840
      %v982 = vadd.f32 %v675, %v889
      %v983 = vadd.f32 %v724, %v938
      %v984 = vadd.f32 %v628, %v842
      %v985 = vadd.f32 %v677, %v891
      %v986 = vadd.f32 %v726, %v940
      %v987 = vadd.f32 %v631, %v845
      %v988 = vadd.f32 %v680, %v894
      %v989 = vadd.f32 %v729, %v943
      %v990 = vadd.f32 %v633, %v847
      %v991 = vadd.f32 %v682, %v896
      %v992 = vadd.f32 %v731, %v945
      %v993 = vadd.f32 %v636, %v850
      %v994 = vadd.f32 %v685, %v899
      %v995 = vadd.f32 %v734, %v948
      %v996 = vadd.f32 %v638, %v852
      %v997 = vadd.f32 %v687, %v901
      %v998 = vadd.f32 %v736, %v950
      %v999 = vadd.f32 %v641, %v855
      %v1000 = vadd.f32 %v690, %v904
      %v1001 = vadd.f32 %v739, %v953
      %v1002 = vadd.f32 %v643, %v857
      %v1003 = vadd.f32 %v692, %v906
      %v1004 = vadd.f32 %v741, %v955
      %v1005 = vld [vmem:[%s259] sm:$0x3f]
      %1006 = vrot.lane.b32.xlu0 %v339, 116
      %v1007 = vpop.permute.xlu0 %1006
      %1008 = vrot.lane.b32.xlu0 %v340, 116
      %v1009 = vpop.permute.xlu0 %1008
      %1010 = vrot.lane.b32.xlu0 %v341, 116
      %v1011 = vpop.permute.xlu0 %1010
      %1012 = vrot.lane.b32.xlu0 %v342, 116
      %v1013 = vpop.permute.xlu0 %1012
      %1014 = vrot.lane.b32.xlu0 %v343, 116
      %v1015 = vpop.permute.xlu0 %1014
      %1016 = vrot.lane.b32.xlu0 %v344, 116
      %v1017 = vpop.permute.xlu0 %1016
      %1018 = vrot.lane.b32.xlu0 %v345, 116
      %v1019 = vpop.permute.xlu0 %1018
      %1020 = vrot.lane.b32.xlu0 %v346, 116
      %v1021 = vpop.permute.xlu0 %1020
      %1023 = vst [vmem:[#allocation1] ss:$4 sm:$0xff] %v1005
      %v1024 = vld.sshfl [vmem:[#allocation1] sm:$0xff pattern:$0x73625140]
      %v1026 = vld.sshfl [vmem:[#allocation1 + $0x8] sm:$0xff pattern:$0x73625140]
      %v1028 = vld.sshfl [vmem:[#allocation1 + $0x10] sm:$0xff pattern:$0x73625140]
      %1030 = vrot.lane.b32.xlu0 %v1024, 110
      %v1031 = vpop.permute.xlu0 %1030
      %1032 = vrot.lane.b32.xlu0 %v1026, 110
      %v1033 = vpop.permute.xlu0 %1032
      %1034 = vrot.lane.b32.xlu0 %v1028, 110
      %v1035 = vpop.permute.xlu0 %1034
      %vm1036 = vcmask 900096
      %v1037 = vsel %vm1036, %v1031, %v1033
      %v1038 = vsel %vm1036, %v1033, %v1035
      %v1040 = vsel %vm380, %v1007, 0
      %v1043 = vsel %vm380, %v1009, 0
      %v1046 = vsel %vm380, %v1011, 0
      %v1049 = vsel %vm380, %v1013, 0
      %v1052 = vsel %vm380, %v1015, 0
      %v1055 = vsel %vm380, %v1017, 0
      %v1058 = vsel %vm380, %v1019, 0
      %v1061 = vsel %vm380, %v1021, 0
      %v1064 = vsel %vm405, %v1037, 0
      %v1067 = vsel %vm405, %v1038, 0
      %v1070 = vsel %vm405, %v1035, 0
      %1072 = vmatpush.bf16.msra.mxu0 0
      %1073 = vmatpush.bf16.msra.mxu0 0
      %1074 = vmatpush.bf16.msra.mxu0 0
      %1075 = vmatpush.bf16.msra.mxu0 0
      %1076 = vmatpush.bf16.msra.mxu0 0
      %1077 = vmatpush.bf16.msra.mxu0 0
      %1078 = vmatpush.bf16.msra.mxu0 0
      %1079 = vmatpush.bf16.msra.mxu0 %v1064
      %1080 = vmatmul.bf16.gmra.mxu0 %v1040
      %v1081 = vpop.f32.mrf.mxu0
      %v1082 = vadd.f32 0.0, %v1081
      %v1083 = vpop.f32.mrf.mxu0
      %v1084 = vadd.f32 0.0, %v1083
      %1085 = vmatmul.bf16.gmra.mxu0 %v1043
      %v1086 = vpop.f32.mrf.mxu0
      %v1087 = vadd.f32 0.0, %v1086
      %v1088 = vpop.f32.mrf.mxu0
      %v1089 = vadd.f32 0.0, %v1088
      %1090 = vmatmul.bf16.gmra.mxu0 %v1046
      %v1091 = vpop.f32.mrf.mxu0
      %v1092 = vadd.f32 0.0, %v1091
      %v1093 = vpop.f32.mrf.mxu0
      %v1094 = vadd.f32 0.0, %v1093
      %1095 = vmatmul.bf16.gmra.mxu0 %v1049
      %v1096 = vpop.f32.mrf.mxu0
      %v1097 = vadd.f32 0.0, %v1096
      %v1098 = vpop.f32.mrf.mxu0
      %v1099 = vadd.f32 0.0, %v1098
      %1100 = vmatmul.bf16.gmra.mxu0 %v1052
      %v1101 = vpop.f32.mrf.mxu0
      %v1102 = vadd.f32 0.0, %v1101
      %v1103 = vpop.f32.mrf.mxu0
      %v1104 = vadd.f32 0.0, %v1103
      %1105 = vmatmul.bf16.gmra.mxu0 %v1055
      %v1106 = vpop.f32.mrf.mxu0
      %v1107 = vadd.f32 0.0, %v1106
      %v1108 = vpop.f32.mrf.mxu0
      %v1109 = vadd.f32 0.0, %v1108
      %1110 = vmatmul.bf16.gmra.mxu0 %v1058
      %v1111 = vpop.f32.mrf.mxu0
      %v1112 = vadd.f32 0.0, %v1111
      %v1113 = vpop.f32.mrf.mxu0
      %v1114 = vadd.f32 0.0, %v1113
      %1115 = vmatmul.bf16.gmra.mxu0 %v1061
      %v1116 = vpop.f32.mrf.mxu0
      %v1117 = vadd.f32 0.0, %v1116
      %v1118 = vpop.f32.mrf.mxu0
      %v1119 = vadd.f32 0.0, %v1118
      %1120 = vdwg.mxu0
      %1121 = vmatpush.bf16.msra.mxu0 0
      %1122 = vmatpush.bf16.msra.mxu0 0
      %1123 = vmatpush.bf16.msra.mxu0 0
      %1124 = vmatpush.bf16.msra.mxu0 0
      %1125 = vmatpush.bf16.msra.mxu0 0
      %1126 = vmatpush.bf16.msra.mxu0 0
      %1127 = vmatpush.bf16.msra.mxu0 0
      %1128 = vmatpush.bf16.msra.mxu0 %v1067
      %1129 = vmatmul.bf16.gmra.mxu0 %v1040
      %v1130 = vpop.f32.mrf.mxu0
      %v1131 = vadd.f32 0.0, %v1130
      %v1132 = vpop.f32.mrf.mxu0
      %v1133 = vadd.f32 0.0, %v1132
      %1134 = vmatmul.bf16.gmra.mxu0 %v1043
      %v1135 = vpop.f32.mrf.mxu0
      %v1136 = vadd.f32 0.0, %v1135
      %v1137 = vpop.f32.mrf.mxu0
      %v1138 = vadd.f32 0.0, %v1137
      %1139 = vmatmul.bf16.gmra.mxu0 %v1046
      %v1140 = vpop.f32.mrf.mxu0
      %v1141 = vadd.f32 0.0, %v1140
      %v1142 = vpop.f32.mrf.mxu0
      %v1143 = vadd.f32 0.0, %v1142
      %1144 = vmatmul.bf16.gmra.mxu0 %v1049
      %v1145 = vpop.f32.mrf.mxu0
      %v1146 = vadd.f32 0.0, %v1145
      %v1147 = vpop.f32.mrf.mxu0
      %v1148 = vadd.f32 0.0, %v1147
      %1149 = vmatmul.bf16.gmra.mxu0 %v1052
      %v1150 = vpop.f32.mrf.mxu0
      %v1151 = vadd.f32 0.0, %v1150
      %v1152 = vpop.f32.mrf.mxu0
      %v1153 = vadd.f32 0.0, %v1152
      %1154 = vmatmul.bf16.gmra.mxu0 %v1055
      %v1155 = vpop.f32.mrf.mxu0
      %v1156 = vadd.f32 0.0, %v1155
      %v1157 = vpop.f32.mrf.mxu0
      %v1158 = vadd.f32 0.0, %v1157
      %1159 = vmatmul.bf16.gmra.mxu0 %v1058
      %v1160 = vpop.f32.mrf.mxu0
      %v1161 = vadd.f32 0.0, %v1160
      %v1162 = vpop.f32.mrf.mxu0
      %v1163 = vadd.f32 0.0, %v1162
      %1164 = vmatmul.bf16.gmra.mxu0 %v1061
      %v1165 = vpop.f32.mrf.mxu0
      %v1166 = vadd.f32 0.0, %v1165
      %v1167 = vpop.f32.mrf.mxu0
      %v1168 = vadd.f32 0.0, %v1167
      %1169 = vdwg.mxu0
      %1170 = vmatpush.bf16.msra.mxu0 0
      %1171 = vmatpush.bf16.msra.mxu0 0
      %1172 = vmatpush.bf16.msra.mxu0 0
      %1173 = vmatpush.bf16.msra.mxu0 0
      %1174 = vmatpush.bf16.msra.mxu0 0
      %1175 = vmatpush.bf16.msra.mxu0 0
      %1176 = vmatpush.bf16.msra.mxu0 0
      %1177 = vmatpush.bf16.msra.mxu0 %v1070
      %1178 = vmatmul.bf16.gmra.mxu0 %v1040
      %v1179 = vpop.f32.mrf.mxu0
      %v1180 = vadd.f32 0.0, %v1179
      %v1181 = vpop.f32.mrf.mxu0
      %v1182 = vadd.f32 0.0, %v1181
      %1183 = vmatmul.bf16.gmra.mxu0 %v1043
      %v1184 = vpop.f32.mrf.mxu0
      %v1185 = vadd.f32 0.0, %v1184
      %v1186 = vpop.f32.mrf.mxu0
      %v1187 = vadd.f32 0.0, %v1186
      %1188 = vmatmul.bf16.gmra.mxu0 %v1046
      %v1189 = vpop.f32.mrf.mxu0
      %v1190 = vadd.f32 0.0, %v1189
      %v1191 = vpop.f32.mrf.mxu0
      %v1192 = vadd.f32 0.0, %v1191
      %1193 = vmatmul.bf16.gmra.mxu0 %v1049
      %v1194 = vpop.f32.mrf.mxu0
      %v1195 = vadd.f32 0.0, %v1194
      %v1196 = vpop.f32.mrf.mxu0
      %v1197 = vadd.f32 0.0, %v1196
      %1198 = vmatmul.bf16.gmra.mxu0 %v1052
      %v1199 = vpop.f32.mrf.mxu0
      %v1200 = vadd.f32 0.0, %v1199
      %v1201 = vpop.f32.mrf.mxu0
      %v1202 = vadd.f32 0.0, %v1201
      %1203 = vmatmul.bf16.gmra.mxu0 %v1055
      %v1204 = vpop.f32.mrf.mxu0
      %v1205 = vadd.f32 0.0, %v1204
      %v1206 = vpop.f32.mrf.mxu0
      %v1207 = vadd.f32 0.0, %v1206
      %1208 = vmatmul.bf16.gmra.mxu0 %v1058
      %v1209 = vpop.f32.mrf.mxu0
      %v1210 = vadd.f32 0.0, %v1209
      %v1211 = vpop.f32.mrf.mxu0
      %v1212 = vadd.f32 0.0, %v1211
      %1213 = vmatmul.bf16.gmra.mxu0 %v1061
      %v1214 = vpop.f32.mrf.mxu0
      %v1215 = vadd.f32 0.0, %v1214
      %v1216 = vpop.f32.mrf.mxu0
      %v1217 = vadd.f32 0.0, %v1216
      %1218 = vdwg.mxu0
      %v1219 = vadd.f32 %v957, %v1082
      %v1220 = vadd.f32 %v958, %v1131
      %v1221 = vadd.f32 %v959, %v1180
      %v1222 = vadd.f32 %v960, %v1084
      %v1223 = vadd.f32 %v961, %v1133
      %v1224 = vadd.f32 %v962, %v1182
      %v1225 = vadd.f32 %v963, %v1087
      %v1226 = vadd.f32 %v964, %v1136
      %v1227 = vadd.f32 %v965, %v1185
      %v1228 = vadd.f32 %v966, %v1089
      %v1229 = vadd.f32 %v967, %v1138
      %v1230 = vadd.f32 %v968, %v1187
      %v1231 = vadd.f32 %v969, %v1092
      %v1232 = vadd.f32 %v970, %v1141
      %v1233 = vadd.f32 %v971, %v1190
      %v1234 = vadd.f32 %v972, %v1094
      %v1235 = vadd.f32 %v973, %v1143
      %v1236 = vadd.f32 %v974, %v1192
      %v1237 = vadd.f32 %v975, %v1097
      %v1238 = vadd.f32 %v976, %v1146
      %v1239 = vadd.f32 %v977, %v1195
      %v1240 = vadd.f32 %v978, %v1099
      %v1241 = vadd.f32 %v979, %v1148
      %v1242 = vadd.f32 %v980, %v1197
      %v1243 = vadd.f32 %v981, %v1102
      %v1244 = vadd.f32 %v982, %v1151
      %v1245 = vadd.f32 %v983, %v1200
      %v1246 = vadd.f32 %v984, %v1104
      %v1247 = vadd.f32 %v985, %v1153
      %v1248 = vadd.f32 %v986, %v1202
      %v1249 = vadd.f32 %v987, %v1107
      %v1250 = vadd.f32 %v988, %v1156
      %v1251 = vadd.f32 %v989, %v1205
      %v1252 = vadd.f32 %v990, %v1109
      %v1253 = vadd.f32 %v991, %v1158
      %v1254 = vadd.f32 %v992, %v1207
      %v1255 = vadd.f32 %v993, %v1112
      %v1256 = vadd.f32 %v994, %v1161
      %v1257 = vadd.f32 %v995, %v1210
      %v1258 = vadd.f32 %v996, %v1114
      %v1259 = vadd.f32 %v997, %v1163
      %v1260 = vadd.f32 %v998, %v1212
      %v1261 = vadd.f32 %v999, %v1117
      %v1262 = vadd.f32 %v1000, %v1166
      %v1263 = vadd.f32 %v1001, %v1215
      %v1264 = vadd.f32 %v1002, %v1119
      %v1265 = vadd.f32 %v1003, %v1168
      %v1266 = vadd.f32 %v1004, %v1217
      %v1267 = vld [vmem:[%s259] sm:$0x3f]
      %1268 = vrot.lane.b32.xlu0 %v339, 112
      %v1269 = vpop.permute.xlu0 %1268
      %1270 = vrot.lane.b32.xlu0 %v340, 112
      %v1271 = vpop.permute.xlu0 %1270
      %1272 = vrot.lane.b32.xlu0 %v341, 112
      %v1273 = vpop.permute.xlu0 %1272
      %1274 = vrot.lane.b32.xlu0 %v342, 112
      %v1275 = vpop.permute.xlu0 %1274
      %1276 = vrot.lane.b32.xlu0 %v343, 112
      %v1277 = vpop.permute.xlu0 %1276
      %1278 = vrot.lane.b32.xlu0 %v344, 112
      %v1279 = vpop.permute.xlu0 %1278
      %1280 = vrot.lane.b32.xlu0 %v345, 112
      %v1281 = vpop.permute.xlu0 %1280
      %1282 = vrot.lane.b32.xlu0 %v346, 112
      %v1283 = vpop.permute.xlu0 %1282
      %1285 = vst [vmem:[#allocation1] ss:$4 sm:$0xff] %v1267
      %v1286 = vld.sshfl [vmem:[#allocation1] sm:$0xff pattern:$0x73625140]
      %v1288 = vld.sshfl [vmem:[#allocation1 + $0x8] sm:$0xff pattern:$0x73625140]
      %v1290 = vld.sshfl [vmem:[#allocation1 + $0x10] sm:$0xff pattern:$0x73625140]
      %1292 = vrot.lane.b32.xlu0 %v1286, 109
      %v1293 = vpop.permute.xlu0 %1292
      %1294 = vrot.lane.b32.xlu0 %v1288, 109
      %v1295 = vpop.permute.xlu0 %1294
      %1296 = vrot.lane.b32.xlu0 %v1290, 109
      %v1297 = vpop.permute.xlu0 %1296
      %vm1298 = vcmask 891904
      %v1299 = vsel %vm1298, %v1293, %v1295
      %v1300 = vsel %vm1298, %v1295, %v1297
      %v1302 = vsel %vm380, %v1269, 0
      %v1305 = vsel %vm380, %v1271, 0
      %v1308 = vsel %vm380, %v1273, 0
      %v1311 = vsel %vm380, %v1275, 0
      %v1314 = vsel %vm380, %v1277, 0
      %v1317 = vsel %vm380, %v1279, 0
      %v1320 = vsel %vm380, %v1281, 0
      %v1323 = vsel %vm380, %v1283, 0
      %v1326 = vsel %vm405, %v1299, 0
      %v1329 = vsel %vm405, %v1300, 0
      %v1332 = vsel %vm405, %v1297, 0
      %1334 = vmatpush.bf16.msra.mxu0 0
      %1335 = vmatpush.bf16.msra.mxu0 0
      %1336 = vmatpush.bf16.msra.mxu0 0
      %1337 = vmatpush.bf16.msra.mxu0 0
      %1338 = vmatpush.bf16.msra.mxu0 0
      %1339 = vmatpush.bf16.msra.mxu0 0
      %1340 = vmatpush.bf16.msra.mxu0 0
      %1341 = vmatpush.bf16.msra.mxu0 %v1326
      %1342 = vmatmul.bf16.gmra.mxu0 %v1302
      %v1343 = vpop.f32.mrf.mxu0
      %v1344 = vadd.f32 0.0, %v1343
      %v1345 = vpop.f32.mrf.mxu0
      %v1346 = vadd.f32 0.0, %v1345
      %1347 = vmatmul.bf16.gmra.mxu0 %v1305
      %v1348 = vpop.f32.mrf.mxu0
      %v1349 = vadd.f32 0.0, %v1348
      %v1350 = vpop.f32.mrf.mxu0
      %v1351 = vadd.f32 0.0, %v1350
      %1352 = vmatmul.bf16.gmra.mxu0 %v1308
      %v1353 = vpop.f32.mrf.mxu0
      %v1354 = vadd.f32 0.0, %v1353
      %v1355 = vpop.f32.mrf.mxu0
      %v1356 = vadd.f32 0.0, %v1355
      %1357 = vmatmul.bf16.gmra.mxu0 %v1311
      %v1358 = vpop.f32.mrf.mxu0
      %v1359 = vadd.f32 0.0, %v1358
      %v1360 = vpop.f32.mrf.mxu0
      %v1361 = vadd.f32 0.0, %v1360
      %1362 = vmatmul.bf16.gmra.mxu0 %v1314
      %v1363 = vpop.f32.mrf.mxu0
      %v1364 = vadd.f32 0.0, %v1363
      %v1365 = vpop.f32.mrf.mxu0
      %v1366 = vadd.f32 0.0, %v1365
      %1367 = vmatmul.bf16.gmra.mxu0 %v1317
      %v1368 = vpop.f32.mrf.mxu0
      %v1369 = vadd.f32 0.0, %v1368
      %v1370 = vpop.f32.mrf.mxu0
      %v1371 = vadd.f32 0.0, %v1370
      %1372 = vmatmul.bf16.gmra.mxu0 %v1320
      %v1373 = vpop.f32.mrf.mxu0
      %v1374 = vadd.f32 0.0, %v1373
      %v1375 = vpop.f32.mrf.mxu0
      %v1376 = vadd.f32 0.0, %v1375
      %1377 = vmatmul.bf16.gmra.mxu0 %v1323
      %v1378 = vpop.f32.mrf.mxu0
      %v1379 = vadd.f32 0.0, %v1378
      %v1380 = vpop.f32.mrf.mxu0
      %v1381 = vadd.f32 0.0, %v1380
      %1382 = vdwg.mxu0
      %1383 = vmatpush.bf16.msra.mxu0 0
      %1384 = vmatpush.bf16.msra.mxu0 0
      %1385 = vmatpush.bf16.msra.mxu0 0
      %1386 = vmatpush.bf16.msra.mxu0 0
      %1387 = vmatpush.bf16.msra.mxu0 0
      %1388 = vmatpush.bf16.msra.mxu0 0
      %1389 = vmatpush.bf16.msra.mxu0 0
      %1390 = vmatpush.bf16.msra.mxu0 %v1329
      %1391 = vmatmul.bf16.gmra.mxu0 %v1302
      %v1392 = vpop.f32.mrf.mxu0
      %v1393 = vadd.f32 0.0, %v1392
      %v1394 = vpop.f32.mrf.mxu0
      %v1395 = vadd.f32 0.0, %v1394
      %1396 = vmatmul.bf16.gmra.mxu0 %v1305
      %v1397 = vpop.f32.mrf.mxu0
      %v1398 = vadd.f32 0.0, %v1397
      %v1399 = vpop.f32.mrf.mxu0
      %v1400 = vadd.f32 0.0, %v1399
      %1401 = vmatmul.bf16.gmra.mxu0 %v1308
      %v1402 = vpop.f32.mrf.mxu0
      %v1403 = vadd.f32 0.0, %v1402
      %v1404 = vpop.f32.mrf.mxu0
      %v1405 = vadd.f32 0.0, %v1404
      %1406 = vmatmul.bf16.gmra.mxu0 %v1311
      %v1407 = vpop.f32.mrf.mxu0
      %v1408 = vadd.f32 0.0, %v1407
      %v1409 = vpop.f32.mrf.mxu0
      %v1410 = vadd.f32 0.0, %v1409
      %1411 = vmatmul.bf16.gmra.mxu0 %v1314
      %v1412 = vpop.f32.mrf.mxu0
      %v1413 = vadd.f32 0.0, %v1412
      %v1414 = vpop.f32.mrf.mxu0
      %v1415 = vadd.f32 0.0, %v1414
      %1416 = vmatmul.bf16.gmra.mxu0 %v1317
      %v1417 = vpop.f32.mrf.mxu0
      %v1418 = vadd.f32 0.0, %v1417
      %v1419 = vpop.f32.mrf.mxu0
      %v1420 = vadd.f32 0.0, %v1419
      %1421 = vmatmul.bf16.gmra.mxu0 %v1320
      %v1422 = vpop.f32.mrf.mxu0
      %v1423 = vadd.f32 0.0, %v1422
      %v1424 = vpop.f32.mrf.mxu0
      %v1425 = vadd.f32 0.0, %v1424
      %1426 = vmatmul.bf16.gmra.mxu0 %v1323
      %v1427 = vpop.f32.mrf.mxu0
      %v1428 = vadd.f32 0.0, %v1427
      %v1429 = vpop.f32.mrf.mxu0
      %v1430 = vadd.f32 0.0, %v1429
      %1431 = vdwg.mxu0
      %1432 = vmatpush.bf16.msra.mxu0 0
      %1433 = vmatpush.bf16.msra.mxu0 0
      %1434 = vmatpush.bf16.msra.mxu0 0
      %1435 = vmatpush.bf16.msra.mxu0 0
      %1436 = vmatpush.bf16.msra.mxu0 0
      %1437 = vmatpush.bf16.msra.mxu0 0
      %1438 = vmatpush.bf16.msra.mxu0 0
      %1439 = vmatpush.bf16.msra.mxu0 %v1332
      %1440 = vmatmul.bf16.gmra.mxu0 %v1302
      %v1441 = vpop.f32.mrf.mxu0
      %v1442 = vadd.f32 0.0, %v1441
      %v1443 = vpop.f32.mrf.mxu0
      %v1444 = vadd.f32 0.0, %v1443
      %1445 = vmatmul.bf16.gmra.mxu0 %v1305
      %v1446 = vpop.f32.mrf.mxu0
      %v1447 = vadd.f32 0.0, %v1446
      %v1448 = vpop.f32.mrf.mxu0
      %v1449 = vadd.f32 0.0, %v1448
      %1450 = vmatmul.bf16.gmra.mxu0 %v1308
      %v1451 = vpop.f32.mrf.mxu0
      %v1452 = vadd.f32 0.0, %v1451
      %v1453 = vpop.f32.mrf.mxu0
      %v1454 = vadd.f32 0.0, %v1453
      %1455 = vmatmul.bf16.gmra.mxu0 %v1311
      %v1456 = vpop.f32.mrf.mxu0
      %v1457 = vadd.f32 0.0, %v1456
      %v1458 = vpop.f32.mrf.mxu0
      %v1459 = vadd.f32 0.0, %v1458
      %1460 = vmatmul.bf16.gmra.mxu0 %v1314
      %v1461 = vpop.f32.mrf.mxu0
      %v1462 = vadd.f32 0.0, %v1461
      %v1463 = vpop.f32.mrf.mxu0
      %v1464 = vadd.f32 0.0, %v1463
      %1465 = vmatmul.bf16.gmra.mxu0 %v1317
      %v1466 = vpop.f32.mrf.mxu0
      %v1467 = vadd.f32 0.0, %v1466
      %v1468 = vpop.f32.mrf.mxu0
      %v1469 = vadd.f32 0.0, %v1468
      %1470 = vmatmul.bf16.gmra.mxu0 %v1320
      %v1471 = vpop.f32.mrf.mxu0
      %v1472 = vadd.f32 0.0, %v1471
      %v1473 = vpop.f32.mrf.mxu0
      %v1474 = vadd.f32 0.0, %v1473
      %1475 = vmatmul.bf16.gmra.mxu0 %v1323
      %v1476 = vpop.f32.mrf.mxu0
      %v1477 = vadd.f32 0.0, %v1476
      %v1478 = vpop.f32.mrf.mxu0
      %v1479 = vadd.f32 0.0, %v1478
      %1480 = vdwg.mxu0
      %v1481 = vadd.f32 %v1219, %v1344
      %v1482 = vadd.f32 %v1220, %v1393
      %v1483 = vadd.f32 %v1221, %v1442
      %v1484 = vadd.f32 %v1222, %v1346
      %v1485 = vadd.f32 %v1223, %v1395
      %v1486 = vadd.f32 %v1224, %v1444
      %v1487 = vadd.f32 %v1225, %v1349
      %v1488 = vadd.f32 %v1226, %v1398
      %v1489 = vadd.f32 %v1227, %v1447
      %v1490 = vadd.f32 %v1228, %v1351
      %v1491 = vadd.f32 %v1229, %v1400
      %v1492 = vadd.f32 %v1230, %v1449
      %v1493 = vadd.f32 %v1231, %v1354
      %v1494 = vadd.f32 %v1232, %v1403
      %v1495 = vadd.f32 %v1233, %v1452
      %v1496 = vadd.f32 %v1234, %v1356
      %v1497 = vadd.f32 %v1235, %v1405
      %v1498 = vadd.f32 %v1236, %v1454
      %v1499 = vadd.f32 %v1237, %v1359
      %v1500 = vadd.f32 %v1238, %v1408
      %v1501 = vadd.f32 %v1239, %v1457
      %v1502 = vadd.f32 %v1240, %v1361
      %v1503 = vadd.f32 %v1241, %v1410
      %v1504 = vadd.f32 %v1242, %v1459
      %v1505 = vadd.f32 %v1243, %v1364
      %v1506 = vadd.f32 %v1244, %v1413
      %v1507 = vadd.f32 %v1245, %v1462
      %v1508 = vadd.f32 %v1246, %v1366
      %v1509 = vadd.f32 %v1247, %v1415
      %v1510 = vadd.f32 %v1248, %v1464
      %v1511 = vadd.f32 %v1249, %v1369
      %v1512 = vadd.f32 %v1250, %v1418
      %v1513 = vadd.f32 %v1251, %v1467
      %v1514 = vadd.f32 %v1252, %v1371
      %v1515 = vadd.f32 %v1253, %v1420
      %v1516 = vadd.f32 %v1254, %v1469
      %v1517 = vadd.f32 %v1255, %v1374
      %v1518 = vadd.f32 %v1256, %v1423
      %v1519 = vadd.f32 %v1257, %v1472
      %v1520 = vadd.f32 %v1258, %v1376
      %v1521 = vadd.f32 %v1259, %v1425
      %v1522 = vadd.f32 %v1260, %v1474
      %v1523 = vadd.f32 %v1261, %v1379
      %v1524 = vadd.f32 %v1262, %v1428
      %v1525 = vadd.f32 %v1263, %v1477
      %v1526 = vadd.f32 %v1264, %v1381
      %v1527 = vadd.f32 %v1265, %v1430
      %v1528 = vadd.f32 %v1266, %v1479
      %v1529 = vld [vmem:[%s259] sm:$0x3f]
      %1530 = vrot.lane.b32.xlu0 %v339, 108
      %v1531 = vpop.permute.xlu0 %1530
      %1532 = vrot.lane.b32.xlu0 %v340, 108
      %v1533 = vpop.permute.xlu0 %1532
      %1534 = vrot.lane.b32.xlu0 %v341, 108
      %v1535 = vpop.permute.xlu0 %1534
      %1536 = vrot.lane.b32.xlu0 %v342, 108
      %v1537 = vpop.permute.xlu0 %1536
      %1538 = vrot.lane.b32.xlu0 %v343, 108
      %v1539 = vpop.permute.xlu0 %1538
      %1540 = vrot.lane.b32.xlu0 %v344, 108
      %v1541 = vpop.permute.xlu0 %1540
      %1542 = vrot.lane.b32.xlu0 %v345, 108
      %v1543 = vpop.permute.xlu0 %1542
      %1544 = vrot.lane.b32.xlu0 %v346, 108
      %v1545 = vpop.permute.xlu0 %1544
      %1547 = vst [vmem:[#allocation1] ss:$4 sm:$0xff] %v1529
      %v1548 = vld.sshfl [vmem:[#allocation1] sm:$0xff pattern:$0x73625140]
      %v1550 = vld.sshfl [vmem:[#allocation1 + $0x8] sm:$0xff pattern:$0x73625140]
      %v1552 = vld.sshfl [vmem:[#allocation1 + $0x10] sm:$0xff pattern:$0x73625140]
      %1554 = vrot.lane.b32.xlu0 %v1548, 108
      %v1555 = vpop.permute.xlu0 %1554
      %1556 = vrot.lane.b32.xlu0 %v1550, 108
      %v1557 = vpop.permute.xlu0 %1556
      %1558 = vrot.lane.b32.xlu0 %v1552, 108
      %v1559 = vpop.permute.xlu0 %1558
      %vm1560 = vcmask 883712
      %v1561 = vsel %vm1560, %v1555, %v1557
      %v1562 = vsel %vm1560, %v1557, %v1559
      %v1564 = vsel %vm380, %v1531, 0
      %v1567 = vsel %vm380, %v1533, 0
      %v1570 = vsel %vm380, %v1535, 0
      %v1573 = vsel %vm380, %v1537, 0
      %v1576 = vsel %vm380, %v1539, 0
      %v1579 = vsel %vm380, %v1541, 0
      %v1582 = vsel %vm380, %v1543, 0
      %v1585 = vsel %vm380, %v1545, 0
      %v1588 = vsel %vm405, %v1561, 0
      %v1591 = vsel %vm405, %v1562, 0
      %v1594 = vsel %vm405, %v1559, 0
      %1596 = vmatpush.bf16.msra.mxu0 0
      %1597 = vmatpush.bf16.msra.mxu0 0
      %1598 = vmatpush.bf16.msra.mxu0 0
      %1599 = vmatpush.bf16.msra.mxu0 0
      %1600 = vmatpush.bf16.msra.mxu0 0
      %1601 = vmatpush.bf16.msra.mxu0 0
      %1602 = vmatpush.bf16.msra.mxu0 0
      %1603 = vmatpush.bf16.msra.mxu0 %v1588
      %1604 = vmatmul.bf16.gmra.mxu0 %v1564
      %v1605 = vpop.f32.mrf.mxu0
      %v1606 = vadd.f32 0.0, %v1605
      %v1607 = vpop.f32.mrf.mxu0
      %v1608 = vadd.f32 0.0, %v1607
      %1609 = vmatmul.bf16.gmra.mxu0 %v1567
      %v1610 = vpop.f32.mrf.mxu0
      %v1611 = vadd.f32 0.0, %v1610
      %v1612 = vpop.f32.mrf.mxu0
      %v1613 = vadd.f32 0.0, %v1612
      %1614 = vmatmul.bf16.gmra.mxu0 %v1570
      %v1615 = vpop.f32.mrf.mxu0
      %v1616 = vadd.f32 0.0, %v1615
      %v1617 = vpop.f32.mrf.mxu0
      %v1618 = vadd.f32 0.0, %v1617
      %1619 = vmatmul.bf16.gmra.mxu0 %v1573
      %v1620 = vpop.f32.mrf.mxu0
      %v1621 = vadd.f32 0.0, %v1620
      %v1622 = vpop.f32.mrf.mxu0
      %v1623 = vadd.f32 0.0, %v1622
      %1624 = vmatmul.bf16.gmra.mxu0 %v1576
      %v1625 = vpop.f32.mrf.mxu0
      %v1626 = vadd.f32 0.0, %v1625
      %v1627 = vpop.f32.mrf.mxu0
      %v1628 = vadd.f32 0.0, %v1627
      %1629 = vmatmul.bf16.gmra.mxu0 %v1579
      %v1630 = vpop.f32.mrf.mxu0
      %v1631 = vadd.f32 0.0, %v1630
      %v1632 = vpop.f32.mrf.mxu0
      %v1633 = vadd.f32 0.0, %v1632
      %1634 = vmatmul.bf16.gmra.mxu0 %v1582
      %v1635 = vpop.f32.mrf.mxu0
      %v1636 = vadd.f32 0.0, %v1635
      %v1637 = vpop.f32.mrf.mxu0
      %v1638 = vadd.f32 0.0, %v1637
      %1639 = vmatmul.bf16.gmra.mxu0 %v1585
      %v1640 = vpop.f32.mrf.mxu0
      %v1641 = vadd.f32 0.0, %v1640
      %v1642 = vpop.f32.mrf.mxu0
      %v1643 = vadd.f32 0.0, %v1642
      %1644 = vdwg.mxu0
      %1645 = vmatpush.bf16.msra.mxu0 0
      %1646 = vmatpush.bf16.msra.mxu0 0
      %1647 = vmatpush.bf16.msra.mxu0 0
      %1648 = vmatpush.bf16.msra.mxu0 0
      %1649 = vmatpush.bf16.msra.mxu0 0
      %1650 = vmatpush.bf16.msra.mxu0 0
      %1651 = vmatpush.bf16.msra.mxu0 0
      %1652 = vmatpush.bf16.msra.mxu0 %v1591
      %1653 = vmatmul.bf16.gmra.mxu0 %v1564
      %v1654 = vpop.f32.mrf.mxu0
      %v1655 = vadd.f32 0.0, %v1654
      %v1656 = vpop.f32.mrf.mxu0
      %v1657 = vadd.f32 0.0, %v1656
      %1658 = vmatmul.bf16.gmra.mxu0 %v1567
      %v1659 = vpop.f32.mrf.mxu0
      %v1660 = vadd.f32 0.0, %v1659
      %v1661 = vpop.f32.mrf.mxu0
      %v1662 = vadd.f32 0.0, %v1661
      %1663 = vmatmul.bf16.gmra.mxu0 %v1570
      %v1664 = vpop.f32.mrf.mxu0
      %v1665 = vadd.f32 0.0, %v1664
      %v1666 = vpop.f32.mrf.mxu0
      %v1667 = vadd.f32 0.0, %v1666
      %1668 = vmatmul.bf16.gmra.mxu0 %v1573
      %v1669 = vpop.f32.mrf.mxu0
      %v1670 = vadd.f32 0.0, %v1669
      %v1671 = vpop.f32.mrf.mxu0
      %v1672 = vadd.f32 0.0, %v1671
      %1673 = vmatmul.bf16.gmra.mxu0 %v1576
      %v1674 = vpop.f32.mrf.mxu0
      %v1675 = vadd.f32 0.0, %v1674
      %v1676 = vpop.f32.mrf.mxu0
      %v1677 = vadd.f32 0.0, %v1676
      %1678 = vmatmul.bf16.gmra.mxu0 %v1579
      %v1679 = vpop.f32.mrf.mxu0
      %v1680 = vadd.f32 0.0, %v1679
      %v1681 = vpop.f32.mrf.mxu0
      %v1682 = vadd.f32 0.0, %v1681
      %1683 = vmatmul.bf16.gmra.mxu0 %v1582
      %v1684 = vpop.f32.mrf.mxu0
      %v1685 = vadd.f32 0.0, %v1684
      %v1686 = vpop.f32.mrf.mxu0
      %v1687 = vadd.f32 0.0, %v1686
      %1688 = vmatmul.bf16.gmra.mxu0 %v1585
      %v1689 = vpop.f32.mrf.mxu0
      %v1690 = vadd.f32 0.0, %v1689
      %v1691 = vpop.f32.mrf.mxu0
      %v1692 = vadd.f32 0.0, %v1691
      %1693 = vdwg.mxu0
      %1694 = vmatpush.bf16.msra.mxu0 0
      %1695 = vmatpush.bf16.msra.mxu0 0
      %1696 = vmatpush.bf16.msra.mxu0 0
      %1697 = vmatpush.bf16.msra.mxu0 0
      %1698 = vmatpush.bf16.msra.mxu0 0
      %1699 = vmatpush.bf16.msra.mxu0 0
      %1700 = vmatpush.bf16.msra.mxu0 0
      %1701 = vmatpush.bf16.msra.mxu0 %v1594
      %1702 = vmatmul.bf16.gmra.mxu0 %v1564
      %v1703 = vpop.f32.mrf.mxu0
      %v1704 = vadd.f32 0.0, %v1703
      %v1705 = vpop.f32.mrf.mxu0
      %v1706 = vadd.f32 0.0, %v1705
      %1707 = vmatmul.bf16.gmra.mxu0 %v1567
      %v1708 = vpop.f32.mrf.mxu0
      %v1709 = vadd.f32 0.0, %v1708
      %v1710 = vpop.f32.mrf.mxu0
      %v1711 = vadd.f32 0.0, %v1710
      %1712 = vmatmul.bf16.gmra.mxu0 %v1570
      %v1713 = vpop.f32.mrf.mxu0
      %v1714 = vadd.f32 0.0, %v1713
      %v1715 = vpop.f32.mrf.mxu0
      %v1716 = vadd.f32 0.0, %v1715
      %1717 = vmatmul.bf16.gmra.mxu0 %v1573
      %v1718 = vpop.f32.mrf.mxu0
      %v1719 = vadd.f32 0.0, %v1718
      %v1720 = vpop.f32.mrf.mxu0
      %v1721 = vadd.f32 0.0, %v1720
      %1722 = vmatmul.bf16.gmra.mxu0 %v1576
      %v1723 = vpop.f32.mrf.mxu0
      %v1724 = vadd.f32 0.0, %v1723
      %v1725 = vpop.f32.mrf.mxu0
      %v1726 = vadd.f32 0.0, %v1725
      %1727 = vmatmul.bf16.gmra.mxu0 %v1579
      %v1728 = vpop.f32.mrf.mxu0
      %v1729 = vadd.f32 0.0, %v1728
      %v1730 = vpop.f32.mrf.mxu0
      %v1731 = vadd.f32 0.0, %v1730
      %1732 = vmatmul.bf16.gmra.mxu0 %v1582
      %v1733 = vpop.f32.mrf.mxu0
      %v1734 = vadd.f32 0.0, %v1733
      %v1735 = vpop.f32.mrf.mxu0
      %v1736 = vadd.f32 0.0, %v1735
      %1737 = vmatmul.bf16.gmra.mxu0 %v1585
      %v1738 = vpop.f32.mrf.mxu0
      %v1739 = vadd.f32 0.0, %v1738
      %v1740 = vpop.f32.mrf.mxu0
      %v1741 = vadd.f32 0.0, %v1740
      %1742 = vdwg.mxu0
      %v1743 = vadd.f32 %v1481, %v1606
      %v1744 = vadd.f32 %v1482, %v1655
      %v1745 = vadd.f32 %v1483, %v1704
      %v1746 = vadd.f32 %v1484, %v1608
      %v1747 = vadd.f32 %v1485, %v1657
      %v1748 = vadd.f32 %v1486, %v1706
      %v1749 = vadd.f32 %v1487, %v1611
      %v1750 = vadd.f32 %v1488, %v1660
      %v1751 = vadd.f32 %v1489, %v1709
      %v1752 = vadd.f32 %v1490, %v1613
      %v1753 = vadd.f32 %v1491, %v1662
      %v1754 = vadd.f32 %v1492, %v1711
      %v1755 = vadd.f32 %v1493, %v1616
      %v1756 = vadd.f32 %v1494, %v1665
      %v1757 = vadd.f32 %v1495, %v1714
      %v1758 = vadd.f32 %v1496, %v1618
      %v1759 = vadd.f32 %v1497, %v1667
      %v1760 = vadd.f32 %v1498, %v1716
      %v1761 = vadd.f32 %v1499, %v1621
      %v1762 = vadd.f32 %v1500, %v1670
      %v1763 = vadd.f32 %v1501, %v1719
      %v1764 = vadd.f32 %v1502, %v1623
      %v1765 = vadd.f32 %v1503, %v1672
      %v1766 = vadd.f32 %v1504, %v1721
      %v1767 = vadd.f32 %v1505, %v1626
      %v1768 = vadd.f32 %v1506, %v1675
      %v1769 = vadd.f32 %v1507, %v1724
      %v1770 = vadd.f32 %v1508, %v1628
      %v1771 = vadd.f32 %v1509, %v1677
      %v1772 = vadd.f32 %v1510, %v1726
      %v1773 = vadd.f32 %v1511, %v1631
      %v1774 = vadd.f32 %v1512, %v1680
      %v1775 = vadd.f32 %v1513, %v1729
      %v1776 = vadd.f32 %v1514, %v1633
      %v1777 = vadd.f32 %v1515, %v1682
      %v1778 = vadd.f32 %v1516, %v1731
      %v1779 = vadd.f32 %v1517, %v1636
      %v1780 = vadd.f32 %v1518, %v1685
      %v1781 = vadd.f32 %v1519, %v1734
      %v1782 = vadd.f32 %v1520, %v1638
      %v1783 = vadd.f32 %v1521, %v1687
      %v1784 = vadd.f32 %v1522, %v1736
      %v1785 = vadd.f32 %v1523, %v1641
      %v1786 = vadd.f32 %v1524, %v1690
      %v1787 = vadd.f32 %v1525, %v1739
      %v1788 = vadd.f32 %v1526, %v1643
      %v1789 = vadd.f32 %v1527, %v1692
      %v1790 = vadd.f32 %v1528, %v1741
      %v1791 = vld [vmem:[%s259] sm:$0x3f]
      %1792 = vrot.lane.b32.xlu0 %v339, 104
      %v1793 = vpop.permute.xlu0 %1792
      %1794 = vrot.lane.b32.xlu0 %v340, 104
      %v1795 = vpop.permute.xlu0 %1794
      %1796 = vrot.lane.b32.xlu0 %v341, 104
      %v1797 = vpop.permute.xlu0 %1796
      %1798 = vrot.lane.b32.xlu0 %v342, 104
      %v1799 = vpop.permute.xlu0 %1798
      %1800 = vrot.lane.b32.xlu0 %v343, 104
      %v1801 = vpop.permute.xlu0 %1800
      %1802 = vrot.lane.b32.xlu0 %v344, 104
      %v1803 = vpop.permute.xlu0 %1802
      %1804 = vrot.lane.b32.xlu0 %v345, 104
      %v1805 = vpop.permute.xlu0 %1804
      %1806 = vrot.lane.b32.xlu0 %v346, 104
      %v1807 = vpop.permute.xlu0 %1806
      %1809 = vst [vmem:[#allocation1] ss:$4 sm:$0xff] %v1791
      %v1810 = vld.sshfl [vmem:[#allocation1] sm:$0xff pattern:$0x73625140]
      %v1812 = vld.sshfl [vmem:[#allocation1 + $0x8] sm:$0xff pattern:$0x73625140]
      %v1814 = vld.sshfl [vmem:[#allocation1 + $0x10] sm:$0xff pattern:$0x73625140]
      %1816 = vrot.lane.b32.xlu0 %v1810, 92
      %v1817 = vpop.permute.xlu0 %1816
      %1818 = vrot.lane.b32.xlu0 %v1812, 92
      %v1819 = vpop.permute.xlu0 %1818
      %1820 = vrot.lane.b32.xlu0 %v1814, 92
      %v1821 = vpop.permute.xlu0 %1820
      %vm1822 = vcmask 752640
      %v1823 = vsel %vm1822, %v1817, %v1819
      %v1824 = vsel %vm1822, %v1819, %v1821
      %v1826 = vsel %vm380, %v1793, 0
      %v1829 = vsel %vm380, %v1795, 0
      %v1832 = vsel %vm380, %v1797, 0
      %v1835 = vsel %vm380, %v1799, 0
      %v1838 = vsel %vm380, %v1801, 0
      %v1841 = vsel %vm380, %v1803, 0
      %v1844 = vsel %vm380, %v1805, 0
      %v1847 = vsel %vm380, %v1807, 0
      %v1850 = vsel %vm405, %v1823, 0
      %v1853 = vsel %vm405, %v1824, 0
      %v1856 = vsel %vm405, %v1821, 0
      %1858 = vmatpush.bf16.msra.mxu0 0
      %1859 = vmatpush.bf16.msra.mxu0 0
      %1860 = vmatpush.bf16.msra.mxu0 0
      %1861 = vmatpush.bf16.msra.mxu0 0
      %1862 = vmatpush.bf16.msra.mxu0 0
      %1863 = vmatpush.bf16.msra.mxu0 0
      %1864 = vmatpush.bf16.msra.mxu0 0
      %1865 = vmatpush.bf16.msra.mxu0 %v1850
      %1866 = vmatmul.bf16.gmra.mxu0 %v1826
      %v1867 = vpop.f32.mrf.mxu0
      %v1868 = vadd.f32 0.0, %v1867
      %v1869 = vpop.f32.mrf.mxu0
      %v1870 = vadd.f32 0.0, %v1869
      %1871 = vmatmul.bf16.gmra.mxu0 %v1829
      %v1872 = vpop.f32.mrf.mxu0
      %v1873 = vadd.f32 0.0, %v1872
      %v1874 = vpop.f32.mrf.mxu0
      %v1875 = vadd.f32 0.0, %v1874
      %1876 = vmatmul.bf16.gmra.mxu0 %v1832
      %v1877 = vpop.f32.mrf.mxu0
      %v1878 = vadd.f32 0.0, %v1877
      %v1879 = vpop.f32.mrf.mxu0
      %v1880 = vadd.f32 0.0, %v1879
      %1881 = vmatmul.bf16.gmra.mxu0 %v1835
      %v1882 = vpop.f32.mrf.mxu0
      %v1883 = vadd.f32 0.0, %v1882
      %v1884 = vpop.f32.mrf.mxu0
      %v1885 = vadd.f32 0.0, %v1884
      %1886 = vmatmul.bf16.gmra.mxu0 %v1838
      %v1887 = vpop.f32.mrf.mxu0
      %v1888 = vadd.f32 0.0, %v1887
      %v1889 = vpop.f32.mrf.mxu0
      %v1890 = vadd.f32 0.0, %v1889
      %1891 = vmatmul.bf16.gmra.mxu0 %v1841
      %v1892 = vpop.f32.mrf.mxu0
      %v1893 = vadd.f32 0.0, %v1892
      %v1894 = vpop.f32.mrf.mxu0
      %v1895 = vadd.f32 0.0, %v1894
      %1896 = vmatmul.bf16.gmra.mxu0 %v1844
      %v1897 = vpop.f32.mrf.mxu0
      %v1898 = vadd.f32 0.0, %v1897
      %v1899 = vpop.f32.mrf.mxu0
      %v1900 = vadd.f32 0.0, %v1899
      %1901 = vmatmul.bf16.gmra.mxu0 %v1847
      %v1902 = vpop.f32.mrf.mxu0
      %v1903 = vadd.f32 0.0, %v1902
      %v1904 = vpop.f32.mrf.mxu0
      %v1905 = vadd.f32 0.0, %v1904
      %1906 = vdwg.mxu0
      %1907 = vmatpush.bf16.msra.mxu0 0
      %1908 = vmatpush.bf16.msra.mxu0 0
      %1909 = vmatpush.bf16.msra.mxu0 0
      %1910 = vmatpush.bf16.msra.mxu0 0
      %1911 = vmatpush.bf16.msra.mxu0 0
      %1912 = vmatpush.bf16.msra.mxu0 0
      %1913 = vmatpush.bf16.msra.mxu0 0
      %1914 = vmatpush.bf16.msra.mxu0 %v1853
      %1915 = vmatmul.bf16.gmra.mxu0 %v1826
      %v1916 = vpop.f32.mrf.mxu0
      %v1917 = vadd.f32 0.0, %v1916
      %v1918 = vpop.f32.mrf.mxu0
      %v1919 = vadd.f32 0.0, %v1918
      %1920 = vmatmul.bf16.gmra.mxu0 %v1829
      %v1921 = vpop.f32.mrf.mxu0
      %v1922 = vadd.f32 0.0, %v1921
      %v1923 = vpop.f32.mrf.mxu0
      %v1924 = vadd.f32 0.0, %v1923
      %1925 = vmatmul.bf16.gmra.mxu0 %v1832
      %v1926 = vpop.f32.mrf.mxu0
      %v1927 = vadd.f32 0.0, %v1926
      %v1928 = vpop.f32.mrf.mxu0
      %v1929 = vadd.f32 0.0, %v1928
      %1930 = vmatmul.bf16.gmra.mxu0 %v1835
      %v1931 = vpop.f32.mrf.mxu0
      %v1932 = vadd.f32 0.0, %v1931
      %v1933 = vpop.f32.mrf.mxu0
      %v1934 = vadd.f32 0.0, %v1933
      %1935 = vmatmul.bf16.gmra.mxu0 %v1838
      %v1936 = vpop.f32.mrf.mxu0
      %v1937 = vadd.f32 0.0, %v1936
      %v1938 = vpop.f32.mrf.mxu0
      %v1939 = vadd.f32 0.0, %v1938
      %1940 = vmatmul.bf16.gmra.mxu0 %v1841
      %v1941 = vpop.f32.mrf.mxu0
      %v1942 = vadd.f32 0.0, %v1941
      %v1943 = vpop.f32.mrf.mxu0
      %v1944 = vadd.f32 0.0, %v1943
      %1945 = vmatmul.bf16.gmra.mxu0 %v1844
      %v1946 = vpop.f32.mrf.mxu0
      %v1947 = vadd.f32 0.0, %v1946
      %v1948 = vpop.f32.mrf.mxu0
      %v1949 = vadd.f32 0.0, %v1948
      %1950 = vmatmul.bf16.gmra.mxu0 %v1847
      %v1951 = vpop.f32.mrf.mxu0
      %v1952 = vadd.f32 0.0, %v1951
      %v1953 = vpop.f32.mrf.mxu0
      %v1954 = vadd.f32 0.0, %v1953
      %1955 = vdwg.mxu0
      %1956 = vmatpush.bf16.msra.mxu0 0
      %1957 = vmatpush.bf16.msra.mxu0 0
      %1958 = vmatpush.bf16.msra.mxu0 0
      %1959 = vmatpush.bf16.msra.mxu0 0
      %1960 = vmatpush.bf16.msra.mxu0 0
      %1961 = vmatpush.bf16.msra.mxu0 0
      %1962 = vmatpush.bf16.msra.mxu0 0
      %1963 = vmatpush.bf16.msra.mxu0 %v1856
      %1964 = vmatmul.bf16.gmra.mxu0 %v1826
      %v1965 = vpop.f32.mrf.mxu0
      %v1966 = vadd.f32 0.0, %v1965
      %v1967 = vpop.f32.mrf.mxu0
      %v1968 = vadd.f32 0.0, %v1967
      %1969 = vmatmul.bf16.gmra.mxu0 %v1829
      %v1970 = vpop.f32.mrf.mxu0
      %v1971 = vadd.f32 0.0, %v1970
      %v1972 = vpop.f32.mrf.mxu0
      %v1973 = vadd.f32 0.0, %v1972
      %1974 = vmatmul.bf16.gmra.mxu0 %v1832
      %v1975 = vpop.f32.mrf.mxu0
      %v1976 = vadd.f32 0.0, %v1975
      %v1977 = vpop.f32.mrf.mxu0
      %v1978 = vadd.f32 0.0, %v1977
      %1979 = vmatmul.bf16.gmra.mxu0 %v1835
      %v1980 = vpop.f32.mrf.mxu0
      %v1981 = vadd.f32 0.0, %v1980
      %v1982 = vpop.f32.mrf.mxu0
      %v1983 = vadd.f32 0.0, %v1982
      %1984 = vmatmul.bf16.gmra.mxu0 %v1838
      %v1985 = vpop.f32.mrf.mxu0
      %v1986 = vadd.f32 0.0, %v1985
      %v1987 = vpop.f32.mrf.mxu0
      %v1988 = vadd.f32 0.0, %v1987
      %1989 = vmatmul.bf16.gmra.mxu0 %v1841
      %v1990 = vpop.f32.mrf.mxu0
      %v1991 = vadd.f32 0.0, %v1990
      %v1992 = vpop.f32.mrf.mxu0
      %v1993 = vadd.f32 0.0, %v1992
      %1994 = vmatmul.bf16.gmra.mxu0 %v1844
      %v1995 = vpop.f32.mrf.mxu0
      %v1996 = vadd.f32 0.0, %v1995
      %v1997 = vpop.f32.mrf.mxu0
      %v1998 = vadd.f32 0.0, %v1997
      %1999 = vmatmul.bf16.gmra.mxu0 %v1847
      %v2000 = vpop.f32.mrf.mxu0
      %v2001 = vadd.f32 0.0, %v2000
      %v2002 = vpop.f32.mrf.mxu0
      %v2003 = vadd.f32 0.0, %v2002
      %2004 = vdwg.mxu0
      %v2005 = vadd.f32 %v1743, %v1868
      %v2006 = vadd.f32 %v1744, %v1917
      %v2007 = vadd.f32 %v1745, %v1966
      %v2008 = vadd.f32 %v1746, %v1870
      %v2009 = vadd.f32 %v1747, %v1919
      %v2010 = vadd.f32 %v1748, %v1968
      %v2011 = vadd.f32 %v1749, %v1873
      %v2012 = vadd.f32 %v1750, %v1922
      %v2013 = vadd.f32 %v1751, %v1971
      %v2014 = vadd.f32 %v1752, %v1875
      %v2015 = vadd.f32 %v1753, %v1924
      %v2016 = vadd.f32 %v1754, %v1973
      %v2017 = vadd.f32 %v1755, %v1878
      %v2018 = vadd.f32 %v1756, %v1927
      %v2019 = vadd.f32 %v1757, %v1976
      %v2020 = vadd.f32 %v1758, %v1880
      %v2021 = vadd.f32 %v1759, %v1929
      %v2022 = vadd.f32 %v1760, %v1978
      %v2023 = vadd.f32 %v1761, %v1883
      %v2024 = vadd.f32 %v1762, %v1932
      %v2025 = vadd.f32 %v1763, %v1981
      %v2026 = vadd.f32 %v1764, %v1885
      %v2027 = vadd.f32 %v1765, %v1934
      %v2028 = vadd.f32 %v1766, %v1983
      %v2029 = vadd.f32 %v1767, %v1888
      %v2030 = vadd.f32 %v1768, %v1937
      %v2031 = vadd.f32 %v1769, %v1986
      %v2032 = vadd.f32 %v1770, %v1890
      %v2033 = vadd.f32 %v1771, %v1939
      %v2034 = vadd.f32 %v1772, %v1988
      %v2035 = vadd.f32 %v1773, %v1893
      %v2036 = vadd.f32 %v1774, %v1942
      %v2037 = vadd.f32 %v1775, %v1991
      %v2038 = vadd.f32 %v1776, %v1895
      %v2039 = vadd.f32 %v1777, %v1944
      %v2040 = vadd.f32 %v1778, %v1993
      %v2041 = vadd.f32 %v1779, %v1898
      %v2042 = vadd.f32 %v1780, %v1947
      %v2043 = vadd.f32 %v1781, %v1996
      %v2044 = vadd.f32 %v1782, %v1900
      %v2045 = vadd.f32 %v1783, %v1949
      %v2046 = vadd.f32 %v1784, %v1998
      %v2047 = vadd.f32 %v1785, %v1903
      %v2048 = vadd.f32 %v1786, %v1952
      %v2049 = vadd.f32 %v1787, %v2001
      %v2050 = vadd.f32 %v1788, %v1905
      %v2051 = vadd.f32 %v1789, %v1954
      %v2052 = vadd.f32 %v1790, %v2003
      %v2053 = vld [vmem:[%s259] sm:$0x3f]
      %2054 = vrot.lane.b32.xlu0 %v339, 100
      %v2055 = vpop.permute.xlu0 %2054
      %2056 = vrot.lane.b32.xlu0 %v340, 100
      %v2057 = vpop.permute.xlu0 %2056
      %2058 = vrot.lane.b32.xlu0 %v341, 100
      %v2059 = vpop.permute.xlu0 %2058
      %2060 = vrot.lane.b32.xlu0 %v342, 100
      %v2061 = vpop.permute.xlu0 %2060
      %2062 = vrot.lane.b32.xlu0 %v343, 100
      %v2063 = vpop.permute.xlu0 %2062
      %2064 = vrot.lane.b32.xlu0 %v344, 100
      %v2065 = vpop.permute.xlu0 %2064
      %2066 = vrot.lane.b32.xlu0 %v345, 100
      %v2067 = vpop.permute.xlu0 %2066
      %2068 = vrot.lane.b32.xlu0 %v346, 100
      %v2069 = vpop.permute.xlu0 %2068
      %2071 = vst [vmem:[#allocation1] ss:$4 sm:$0xff] %v2053
      %v2072 = vld.sshfl [vmem:[#allocation1] sm:$0xff pattern:$0x73625140]
      %v2074 = vld.sshfl [vmem:[#allocation1 + $0x8] sm:$0xff pattern:$0x73625140]
      %v2076 = vld.sshfl [vmem:[#allocation1 + $0x10] sm:$0xff pattern:$0x73625140]
      %2078 = vrot.lane.b32.xlu0 %v2072, 91
      %v2079 = vpop.permute.xlu0 %2078
      %2080 = vrot.lane.b32.xlu0 %v2074, 91
      %v2081 = vpop.permute.xlu0 %2080
      %2082 = vrot.lane.b32.xlu0 %v2076, 91
      %v2083 = vpop.permute.xlu0 %2082
      %vm2084 = vcmask 744448
      %v2085 = vsel %vm2084, %v2079, %v2081
      %v2086 = vsel %vm2084, %v2081, %v2083
      %v2088 = vsel %vm380, %v2055, 0
      %v2091 = vsel %vm380, %v2057, 0
      %v2094 = vsel %vm380, %v2059, 0
      %v2097 = vsel %vm380, %v2061, 0
      %v2100 = vsel %vm380, %v2063, 0
      %v2103 = vsel %vm380, %v2065, 0
      %v2106 = vsel %vm380, %v2067, 0
      %v2109 = vsel %vm380, %v2069, 0
      %v2112 = vsel %vm405, %v2085, 0
      %v2115 = vsel %vm405, %v2086, 0
      %v2118 = vsel %vm405, %v2083, 0
      %2120 = vmatpush.bf16.msra.mxu0 0
      %2121 = vmatpush.bf16.msra.mxu0 0
      %2122 = vmatpush.bf16.msra.mxu0 0
      %2123 = vmatpush.bf16.msra.mxu0 0
      %2124 = vmatpush.bf16.msra.mxu0 0
      %2125 = vmatpush.bf16.msra.mxu0 0
      %2126 = vmatpush.bf16.msra.mxu0 0
      %2127 = vmatpush.bf16.msra.mxu0 %v2112
      %2128 = vmatmul.bf16.gmra.mxu0 %v2088
      %v2129 = vpop.f32.mrf.mxu0
      %v2130 = vadd.f32 0.0, %v2129
      %v2131 = vpop.f32.mrf.mxu0
      %v2132 = vadd.f32 0.0, %v2131
      %2133 = vmatmul.bf16.gmra.mxu0 %v2091
      %v2134 = vpop.f32.mrf.mxu0
      %v2135 = vadd.f32 0.0, %v2134
      %v2136 = vpop.f32.mrf.mxu0
      %v2137 = vadd.f32 0.0, %v2136
      %2138 = vmatmul.bf16.gmra.mxu0 %v2094
      %v2139 = vpop.f32.mrf.mxu0
      %v2140 = vadd.f32 0.0, %v2139
      %v2141 = vpop.f32.mrf.mxu0
      %v2142 = vadd.f32 0.0, %v2141
      %2143 = vmatmul.bf16.gmra.mxu0 %v2097
      %v2144 = vpop.f32.mrf.mxu0
      %v2145 = vadd.f32 0.0, %v2144
      %v2146 = vpop.f32.mrf.mxu0
      %v2147 = vadd.f32 0.0, %v2146
      %2148 = vmatmul.bf16.gmra.mxu0 %v2100
      %v2149 = vpop.f32.mrf.mxu0
      %v2150 = vadd.f32 0.0, %v2149
      %v2151 = vpop.f32.mrf.mxu0
      %v2152 = vadd.f32 0.0, %v2151
      %2153 = vmatmul.bf16.gmra.mxu0 %v2103
      %v2154 = vpop.f32.mrf.mxu0
      %v2155 = vadd.f32 0.0, %v2154
      %v2156 = vpop.f32.mrf.mxu0
      %v2157 = vadd.f32 0.0, %v2156
      %2158 = vmatmul.bf16.gmra.mxu0 %v2106
      %v2159 = vpop.f32.mrf.mxu0
      %v2160 = vadd.f32 0.0, %v2159
      %v2161 = vpop.f32.mrf.mxu0
      %v2162 = vadd.f32 0.0, %v2161
      %2163 = vmatmul.bf16.gmra.mxu0 %v2109
      %v2164 = vpop.f32.mrf.mxu0
      %v2165 = vadd.f32 0.0, %v2164
      %v2166 = vpop.f32.mrf.mxu0
      %v2167 = vadd.f32 0.0, %v2166
      %2168 = vdwg.mxu0
      %2169 = vmatpush.bf16.msra.mxu0 0
      %2170 = vmatpush.bf16.msra.mxu0 0
      %2171 = vmatpush.bf16.msra.mxu0 0
      %2172 = vmatpush.bf16.msra.mxu0 0
      %2173 = vmatpush.bf16.msra.mxu0 0
      %2174 = vmatpush.bf16.msra.mxu0 0
      %2175 = vmatpush.bf16.msra.mxu0 0
      %2176 = vmatpush.bf16.msra.mxu0 %v2115
      %2177 = vmatmul.bf16.gmra.mxu0 %v2088
      %v2178 = vpop.f32.mrf.mxu0
      %v2179 = vadd.f32 0.0, %v2178
      %v2180 = vpop.f32.mrf.mxu0
      %v2181 = vadd.f32 0.0, %v2180
      %2182 = vmatmul.bf16.gmra.mxu0 %v2091
      %v2183 = vpop.f32.mrf.mxu0
      %v2184 = vadd.f32 0.0, %v2183
      %v2185 = vpop.f32.mrf.mxu0
      %v2186 = vadd.f32 0.0, %v2185
      %2187 = vmatmul.bf16.gmra.mxu0 %v2094
      %v2188 = vpop.f32.mrf.mxu0
      %v2189 = vadd.f32 0.0, %v2188
      %v2190 = vpop.f32.mrf.mxu0
      %v2191 = vadd.f32 0.0, %v2190
      %2192 = vmatmul.bf16.gmra.mxu0 %v2097
      %v2193 = vpop.f32.mrf.mxu0
      %v2194 = vadd.f32 0.0, %v2193
      %v2195 = vpop.f32.mrf.mxu0
      %v2196 = vadd.f32 0.0, %v2195
      %2197 = vmatmul.bf16.gmra.mxu0 %v2100
      %v2198 = vpop.f32.mrf.mxu0
      %v2199 = vadd.f32 0.0, %v2198
      %v2200 = vpop.f32.mrf.mxu0
      %v2201 = vadd.f32 0.0, %v2200
      %2202 = vmatmul.bf16.gmra.mxu0 %v2103
      %v2203 = vpop.f32.mrf.mxu0
      %v2204 = vadd.f32 0.0, %v2203
      %v2205 = vpop.f32.mrf.mxu0
      %v2206 = vadd.f32 0.0, %v2205
      %2207 = vmatmul.bf16.gmra.mxu0 %v2106
      %v2208 = vpop.f32.mrf.mxu0
      %v2209 = vadd.f32 0.0, %v2208
      %v2210 = vpop.f32.mrf.mxu0
      %v2211 = vadd.f32 0.0, %v2210
      %2212 = vmatmul.bf16.gmra.mxu0 %v2109
      %v2213 = vpop.f32.mrf.mxu0
      %v2214 = vadd.f32 0.0, %v2213
      %v2215 = vpop.f32.mrf.mxu0
      %v2216 = vadd.f32 0.0, %v2215
      %2217 = vdwg.mxu0
      %2218 = vmatpush.bf16.msra.mxu0 0
      %2219 = vmatpush.bf16.msra.mxu0 0
      %2220 = vmatpush.bf16.msra.mxu0 0
      %2221 = vmatpush.bf16.msra.mxu0 0
      %2222 = vmatpush.bf16.msra.mxu0 0
      %2223 = vmatpush.bf16.msra.mxu0 0
      %2224 = vmatpush.bf16.msra.mxu0 0
      %2225 = vmatpush.bf16.msra.mxu0 %v2118
      %2226 = vmatmul.bf16.gmra.mxu0 %v2088
      %v2227 = vpop.f32.mrf.mxu0
      %v2228 = vadd.f32 0.0, %v2227
      %v2229 = vpop.f32.mrf.mxu0
      %v2230 = vadd.f32 0.0, %v2229
      %2231 = vmatmul.bf16.gmra.mxu0 %v2091
      %v2232 = vpop.f32.mrf.mxu0
      %v2233 = vadd.f32 0.0, %v2232
      %v2234 = vpop.f32.mrf.mxu0
      %v2235 = vadd.f32 0.0, %v2234
      %2236 = vmatmul.bf16.gmra.mxu0 %v2094
      %v2237 = vpop.f32.mrf.mxu0
      %v2238 = vadd.f32 0.0, %v2237
      %v2239 = vpop.f32.mrf.mxu0
      %v2240 = vadd.f32 0.0, %v2239
      %2241 = vmatmul.bf16.gmra.mxu0 %v2097
      %v2242 = vpop.f32.mrf.mxu0
      %v2243 = vadd.f32 0.0, %v2242
      %v2244 = vpop.f32.mrf.mxu0
      %v2245 = vadd.f32 0.0, %v2244
      %2246 = vmatmul.bf16.gmra.mxu0 %v2100
      %v2247 = vpop.f32.mrf.mxu0
      %v2248 = vadd.f32 0.0, %v2247
      %v2249 = vpop.f32.mrf.mxu0
      %v2250 = vadd.f32 0.0, %v2249
      %2251 = vmatmul.bf16.gmra.mxu0 %v2103
      %v2252 = vpop.f32.mrf.mxu0
      %v2253 = vadd.f32 0.0, %v2252
      %v2254 = vpop.f32.mrf.mxu0
      %v2255 = vadd.f32 0.0, %v2254
      %2256 = vmatmul.bf16.gmra.mxu0 %v2106
      %v2257 = vpop.f32.mrf.mxu0
      %v2258 = vadd.f32 0.0, %v2257
      %v2259 = vpop.f32.mrf.mxu0
      %v2260 = vadd.f32 0.0, %v2259
      %2261 = vmatmul.bf16.gmra.mxu0 %v2109
      %v2262 = vpop.f32.mrf.mxu0
      %v2263 = vadd.f32 0.0, %v2262
      %v2264 = vpop.f32.mrf.mxu0
      %v2265 = vadd.f32 0.0, %v2264
      %2266 = vdwg.mxu0
      %v2267 = vadd.f32 %v2005, %v2130
      %v2268 = vadd.f32 %v2006, %v2179
      %v2269 = vadd.f32 %v2007, %v2228
      %v2270 = vadd.f32 %v2008, %v2132
      %v2271 = vadd.f32 %v2009, %v2181
      %v2272 = vadd.f32 %v2010, %v2230
      %v2273 = vadd.f32 %v2011, %v2135
      %v2274 = vadd.f32 %v2012, %v2184
      %v2275 = vadd.f32 %v2013, %v2233
      %v2276 = vadd.f32 %v2014, %v2137
      %v2277 = vadd.f32 %v2015, %v2186
      %v2278 = vadd.f32 %v2016, %v2235
      %v2279 = vadd.f32 %v2017, %v2140
      %v2280 = vadd.f32 %v2018, %v2189
      %v2281 = vadd.f32 %v2019, %v2238
      %v2282 = vadd.f32 %v2020, %v2142
      %v2283 = vadd.f32 %v2021, %v2191
      %v2284 = vadd.f32 %v2022, %v2240
      %v2285 = vadd.f32 %v2023, %v2145
      %v2286 = vadd.f32 %v2024, %v2194
      %v2287 = vadd.f32 %v2025, %v2243
      %v2288 = vadd.f32 %v2026, %v2147
      %v2289 = vadd.f32 %v2027, %v2196
      %v2290 = vadd.f32 %v2028, %v2245
      %v2291 = vadd.f32 %v2029, %v2150
      %v2292 = vadd.f32 %v2030, %v2199
      %v2293 = vadd.f32 %v2031, %v2248
      %v2294 = vadd.f32 %v2032, %v2152
      %v2295 = vadd.f32 %v2033, %v2201
      %v2296 = vadd.f32 %v2034, %v2250
      %v2297 = vadd.f32 %v2035, %v2155
      %v2298 = vadd.f32 %v2036, %v2204
      %v2299 = vadd.f32 %v2037, %v2253
      %v2300 = vadd.f32 %v2038, %v2157
      %v2301 = vadd.f32 %v2039, %v2206
      %v2302 = vadd.f32 %v2040, %v2255
      %v2303 = vadd.f32 %v2041, %v2160
      %v2304 = vadd.f32 %v2042, %v2209
      %v2305 = vadd.f32 %v2043, %v2258
      %v2306 = vadd.f32 %v2044, %v2162
      %v2307 = vadd.f32 %v2045, %v2211
      %v2308 = vadd.f32 %v2046, %v2260
      %v2309 = vadd.f32 %v2047, %v2165
      %v2310 = vadd.f32 %v2048, %v2214
      %v2311 = vadd.f32 %v2049, %v2263
      %v2312 = vadd.f32 %v2050, %v2167
      %v2313 = vadd.f32 %v2051, %v2216
      %v2314 = vadd.f32 %v2052, %v2265
      %v2315 = vld [vmem:[%s259] sm:$0x3f]
      %2316 = vrot.lane.b32.xlu0 %v339, 96
      %v2317 = vpop.permute.xlu0 %2316
      %2318 = vrot.lane.b32.xlu0 %v340, 96
      %v2319 = vpop.permute.xlu0 %2318
      %2320 = vrot.lane.b32.xlu0 %v341, 96
      %v2321 = vpop.permute.xlu0 %2320
      %2322 = vrot.lane.b32.xlu0 %v342, 96
      %v2323 = vpop.permute.xlu0 %2322
      %2324 = vrot.lane.b32.xlu0 %v343, 96
      %v2325 = vpop.permute.xlu0 %2324
      %2326 = vrot.lane.b32.xlu0 %v344, 96
      %v2327 = vpop.permute.xlu0 %2326
      %2328 = vrot.lane.b32.xlu0 %v345, 96
      %v2329 = vpop.permute.xlu0 %2328
      %2330 = vrot.lane.b32.xlu0 %v346, 96
      %v2331 = vpop.permute.xlu0 %2330
      %2333 = vst [vmem:[#allocation1] ss:$4 sm:$0xff] %v2315
      %v2334 = vld.sshfl [vmem:[#allocation1] sm:$0xff pattern:$0x73625140]
      %v2336 = vld.sshfl [vmem:[#allocation1 + $0x8] sm:$0xff pattern:$0x73625140]
      %v2338 = vld.sshfl [vmem:[#allocation1 + $0x10] sm:$0xff pattern:$0x73625140]
      %2340 = vrot.lane.b32.xlu0 %v2334, 90
      %v2341 = vpop.permute.xlu0 %2340
      %2342 = vrot.lane.b32.xlu0 %v2336, 90
      %v2343 = vpop.permute.xlu0 %2342
      %2344 = vrot.lane.b32.xlu0 %v2338, 90
      %v2345 = vpop.permute.xlu0 %2344
      %vm2346 = vcmask 736256
      %v2347 = vsel %vm2346, %v2341, %v2343
      %v2348 = vsel %vm2346, %v2343, %v2345
      %v2350 = vsel %vm380, %v2317, 0
      %v2353 = vsel %vm380, %v2319, 0
      %v2356 = vsel %vm380, %v2321, 0
      %v2359 = vsel %vm380, %v2323, 0
      %v2362 = vsel %vm380, %v2325, 0
      %v2365 = vsel %vm380, %v2327, 0
      %v2368 = vsel %vm380, %v2329, 0
      %v2371 = vsel %vm380, %v2331, 0
      %v2374 = vsel %vm405, %v2347, 0
      %v2377 = vsel %vm405, %v2348, 0
      %v2380 = vsel %vm405, %v2345, 0
      %2382 = vmatpush.bf16.msra.mxu0 0
      %2383 = vmatpush.bf16.msra.mxu0 0
      %2384 = vmatpush.bf16.msra.mxu0 0
      %2385 = vmatpush.bf16.msra.mxu0 0
      %2386 = vmatpush.bf16.msra.mxu0 0
      %2387 = vmatpush.bf16.msra.mxu0 0
      %2388 = vmatpush.bf16.msra.mxu0 0
      %2389 = vmatpush.bf16.msra.mxu0 %v2374
      %2390 = vmatmul.bf16.gmra.mxu0 %v2350
      %v2391 = vpop.f32.mrf.mxu0
      %v2392 = vadd.f32 0.0, %v2391
      %v2393 = vpop.f32.mrf.mxu0
      %v2394 = vadd.f32 0.0, %v2393
      %2395 = vmatmul.bf16.gmra.mxu0 %v2353
      %v2396 = vpop.f32.mrf.mxu0
      %v2397 = vadd.f32 0.0, %v2396
      %v2398 = vpop.f32.mrf.mxu0
      %v2399 = vadd.f32 0.0, %v2398
      %2400 = vmatmul.bf16.gmra.mxu0 %v2356
      %v2401 = vpop.f32.mrf.mxu0
      %v2402 = vadd.f32 0.0, %v2401
      %v2403 = vpop.f32.mrf.mxu0
      %v2404 = vadd.f32 0.0, %v2403
      %2405 = vmatmul.bf16.gmra.mxu0 %v2359
      %v2406 = vpop.f32.mrf.mxu0
      %v2407 = vadd.f32 0.0, %v2406
      %v2408 = vpop.f32.mrf.mxu0
      %v2409 = vadd.f32 0.0, %v2408
      %2410 = vmatmul.bf16.gmra.mxu0 %v2362
      %v2411 = vpop.f32.mrf.mxu0
      %v2412 = vadd.f32 0.0, %v2411
      %v2413 = vpop.f32.mrf.mxu0
      %v2414 = vadd.f32 0.0, %v2413
      %2415 = vmatmul.bf16.gmra.mxu0 %v2365
      %v2416 = vpop.f32.mrf.mxu0
      %v2417 = vadd.f32 0.0, %v2416
      %v2418 = vpop.f32.mrf.mxu0
      %v2419 = vadd.f32 0.0, %v2418
      %2420 = vmatmul.bf16.gmra.mxu0 %v2368
      %v2421 = vpop.f32.mrf.mxu0
      %v2422 = vadd.f32 0.0, %v2421
      %v2423 = vpop.f32.mrf.mxu0
      %v2424 = vadd.f32 0.0, %v2423
      %2425 = vmatmul.bf16.gmra.mxu0 %v2371
      %v2426 = vpop.f32.mrf.mxu0
      %v2427 = vadd.f32 0.0, %v2426
      %v2428 = vpop.f32.mrf.mxu0
      %v2429 = vadd.f32 0.0, %v2428
      %2430 = vdwg.mxu0
      %2431 = vmatpush.bf16.msra.mxu0 0
      %2432 = vmatpush.bf16.msra.mxu0 0
      %2433 = vmatpush.bf16.msra.mxu0 0
      %2434 = vmatpush.bf16.msra.mxu0 0
      %2435 = vmatpush.bf16.msra.mxu0 0
      %2436 = vmatpush.bf16.msra.mxu0 0
      %2437 = vmatpush.bf16.msra.mxu0 0
      %2438 = vmatpush.bf16.msra.mxu0 %v2377
      %2439 = vmatmul.bf16.gmra.mxu0 %v2350
      %v2440 = vpop.f32.mrf.mxu0
      %v2441 = vadd.f32 0.0, %v2440
      %v2442 = vpop.f32.mrf.mxu0
      %v2443 = vadd.f32 0.0, %v2442
      %2444 = vmatmul.bf16.gmra.mxu0 %v2353
      %v2445 = vpop.f32.mrf.mxu0
      %v2446 = vadd.f32 0.0, %v2445
      %v2447 = vpop.f32.mrf.mxu0
      %v2448 = vadd.f32 0.0, %v2447
      %2449 = vmatmul.bf16.gmra.mxu0 %v2356
      %v2450 = vpop.f32.mrf.mxu0
      %v2451 = vadd.f32 0.0, %v2450
      %v2452 = vpop.f32.mrf.mxu0
      %v2453 = vadd.f32 0.0, %v2452
      %2454 = vmatmul.bf16.gmra.mxu0 %v2359
      %v2455 = vpop.f32.mrf.mxu0
      %v2456 = vadd.f32 0.0, %v2455
      %v2457 = vpop.f32.mrf.mxu0
      %v2458 = vadd.f32 0.0, %v2457
      %2459 = vmatmul.bf16.gmra.mxu0 %v2362
      %v2460 = vpop.f32.mrf.mxu0
      %v2461 = vadd.f32 0.0, %v2460
      %v2462 = vpop.f32.mrf.mxu0
      %v2463 = vadd.f32 0.0, %v2462
      %2464 = vmatmul.bf16.gmra.mxu0 %v2365
      %v2465 = vpop.f32.mrf.mxu0
      %v2466 = vadd.f32 0.0, %v2465
      %v2467 = vpop.f32.mrf.mxu0
      %v2468 = vadd.f32 0.0, %v2467
      %2469 = vmatmul.bf16.gmra.mxu0 %v2368
      %v2470 = vpop.f32.mrf.mxu0
      %v2471 = vadd.f32 0.0, %v2470
      %v2472 = vpop.f32.mrf.mxu0
      %v2473 = vadd.f32 0.0, %v2472
      %2474 = vmatmul.bf16.gmra.mxu0 %v2371
      %v2475 = vpop.f32.mrf.mxu0
      %v2476 = vadd.f32 0.0, %v2475
      %v2477 = vpop.f32.mrf.mxu0
      %v2478 = vadd.f32 0.0, %v2477
      %2479 = vdwg.mxu0
      %2480 = vmatpush.bf16.msra.mxu0 0
      %2481 = vmatpush.bf16.msra.mxu0 0
      %2482 = vmatpush.bf16.msra.mxu0 0
      %2483 = vmatpush.bf16.msra.mxu0 0
      %2484 = vmatpush.bf16.msra.mxu0 0
      %2485 = vmatpush.bf16.msra.mxu0 0
      %2486 = vmatpush.bf16.msra.mxu0 0
      %2487 = vmatpush.bf16.msra.mxu0 %v2380
      %2488 = vmatmul.bf16.gmra.mxu0 %v2350
      %v2489 = vpop.f32.mrf.mxu0
      %v2490 = vadd.f32 0.0, %v2489
      %v2491 = vpop.f32.mrf.mxu0
      %v2492 = vadd.f32 0.0, %v2491
      %2493 = vmatmul.bf16.gmra.mxu0 %v2353
      %v2494 = vpop.f32.mrf.mxu0
      %v2495 = vadd.f32 0.0, %v2494
      %v2496 = vpop.f32.mrf.mxu0
      %v2497 = vadd.f32 0.0, %v2496
      %2498 = vmatmul.bf16.gmra.mxu0 %v2356
      %v2499 = vpop.f32.mrf.mxu0
      %v2500 = vadd.f32 0.0, %v2499
      %v2501 = vpop.f32.mrf.mxu0
      %v2502 = vadd.f32 0.0, %v2501
      %2503 = vmatmul.bf16.gmra.mxu0 %v2359
      %v2504 = vpop.f32.mrf.mxu0
      %v2505 = vadd.f32 0.0, %v2504
      %v2506 = vpop.f32.mrf.mxu0
      %v2507 = vadd.f32 0.0, %v2506
      %2508 = vmatmul.bf16.gmra.mxu0 %v2362
      %v2509 = vpop.f32.mrf.mxu0
      %v2510 = vadd.f32 0.0, %v2509
      %v2511 = vpop.f32.mrf.mxu0
      %v2512 = vadd.f32 0.0, %v2511
      %2513 = vmatmul.bf16.gmra.mxu0 %v2365
      %v2514 = vpop.f32.mrf.mxu0
      %v2515 = vadd.f32 0.0, %v2514
      %v2516 = vpop.f32.mrf.mxu0
      %v2517 = vadd.f32 0.0, %v2516
      %2518 = vmatmul.bf16.gmra.mxu0 %v2368
      %v2519 = vpop.f32.mrf.mxu0
      %v2520 = vadd.f32 0.0, %v2519
      %v2521 = vpop.f32.mrf.mxu0
      %v2522 = vadd.f32 0.0, %v2521
      %2523 = vmatmul.bf16.gmra.mxu0 %v2371
      %v2524 = vpop.f32.mrf.mxu0
      %v2525 = vadd.f32 0.0, %v2524
      %v2526 = vpop.f32.mrf.mxu0
      %v2527 = vadd.f32 0.0, %v2526
      %2528 = vdwg.mxu0
      %v2529 = vadd.f32 %v2267, %v2392
      %v2530 = vadd.f32 %v2268, %v2441
      %v2531 = vadd.f32 %v2269, %v2490
      %v2532 = vadd.f32 %v2270, %v2394
      %v2533 = vadd.f32 %v2271, %v2443
      %v2534 = vadd.f32 %v2272, %v2492
      %v2535 = vadd.f32 %v2273, %v2397
      %v2536 = vadd.f32 %v2274, %v2446
      %v2537 = vadd.f32 %v2275, %v2495
      %v2538 = vadd.f32 %v2276, %v2399
      %v2539 = vadd.f32 %v2277, %v2448
      %v2540 = vadd.f32 %v2278, %v2497
      %v2541 = vadd.f32 %v2279, %v2402
      %v2542 = vadd.f32 %v2280, %v2451
      %v2543 = vadd.f32 %v2281, %v2500
      %v2544 = vadd.f32 %v2282, %v2404
      %v2545 = vadd.f32 %v2283, %v2453
      %v2546 = vadd.f32 %v2284, %v2502
      %v2547 = vadd.f32 %v2285, %v2407
      %v2548 = vadd.f32 %v2286, %v2456
      %v2549 = vadd.f32 %v2287, %v2505
      %v2550 = vadd.f32 %v2288, %v2409
      %v2551 = vadd.f32 %v2289, %v2458
      %v2552 = vadd.f32 %v2290, %v2507
      %v2553 = vadd.f32 %v2291, %v2412
      %v2554 = vadd.f32 %v2292, %v2461
      %v2555 = vadd.f32 %v2293, %v2510
      %v2556 = vadd.f32 %v2294, %v2414
      %v2557 = vadd.f32 %v2295, %v2463
      %v2558 = vadd.f32 %v2296, %v2512
      %v2559 = vadd.f32 %v2297, %v2417
      %v2560 = vadd.f32 %v2298, %v2466
      %v2561 = vadd.f32 %v2299, %v2515
      %v2562 = vadd.f32 %v2300, %v2419
      %v2563 = vadd.f32 %v2301, %v2468
      %v2564 = vadd.f32 %v2302, %v2517
      %v2565 = vadd.f32 %v2303, %v2422
      %v2566 = vadd.f32 %v2304, %v2471
      %v2567 = vadd.f32 %v2305, %v2520
      %v2568 = vadd.f32 %v2306, %v2424
      %v2569 = vadd.f32 %v2307, %v2473
      %v2570 = vadd.f32 %v2308, %v2522
      %v2571 = vadd.f32 %v2309, %v2427
      %v2572 = vadd.f32 %v2310, %v2476
      %v2573 = vadd.f32 %v2311, %v2525
      %v2574 = vadd.f32 %v2312, %v2429
      %v2575 = vadd.f32 %v2313, %v2478
      %v2576 = vadd.f32 %v2314, %v2527
      %v2577 = vld [vmem:[%s270] sm:$0xff]
      %v2578 = vld [vmem:[%s270 + $0x8] sm:$0xff]
      %v2579 = vld [vmem:[%s270 + $0x10] sm:$0xff]
      %v2580 = vld [vmem:[%s270 + $0x18] sm:$0xff]
      %v2581 = vld [vmem:[%s270 + $0x20] sm:$0xff]
      %v2582 = vld [vmem:[%s270 + $0x28] sm:$0xff]
      %v2583 = vld [vmem:[%s270 + $0x30] sm:$0xff]
      %v2584 = vld [vmem:[%s270 + $0x38] sm:$0xff]
      %v2585 = vld [vmem:[%s270 + $0x40] sm:$0xff]
      %v2586 = vld [vmem:[%s270 + $0x48] sm:$0xff]
      %v2587 = vld [vmem:[%s270 + $0x50] sm:$0xff]
      %v2588 = vld [vmem:[%s270 + $0x58] sm:$0xff]
      %v2589 = vld [vmem:[%s270 + $0x60] sm:$0xff]
      %v2590 = vld [vmem:[%s270 + $0x68] sm:$0xff]
      %v2591 = vld [vmem:[%s270 + $0x70] sm:$0xff]
      %v2592 = vld [vmem:[%s270 + $0x78] sm:$0xff]
      %2594 = vset.pattern.permute.xlu0 0
      %2595 = vperm.xlu0 %2594, %v2577
      %v2596 = vpop.permute.xlu0 %2595
      %2599 = vset.pattern.permute.xlu0 0
      %2600 = vperm.xlu0 %2599, %v2578
      %v2601 = vpop.permute.xlu0 %2600
      %2604 = vset.pattern.permute.xlu0 0
      %2605 = vperm.xlu0 %2604, %v2579
      %v2606 = vpop.permute.xlu0 %2605
      %2609 = vset.pattern.permute.xlu0 0
      %2610 = vperm.xlu0 %2609, %v2580
      %v2611 = vpop.permute.xlu0 %2610
      %2614 = vset.pattern.permute.xlu0 0
      %2615 = vperm.xlu0 %2614, %v2581
      %v2616 = vpop.permute.xlu0 %2615
      %2619 = vset.pattern.permute.xlu0 0
      %2620 = vperm.xlu0 %2619, %v2582
      %v2621 = vpop.permute.xlu0 %2620
      %2624 = vset.pattern.permute.xlu0 0
      %2625 = vperm.xlu0 %2624, %v2583
      %v2626 = vpop.permute.xlu0 %2625
      %2629 = vset.pattern.permute.xlu0 0
      %2630 = vperm.xlu0 %2629, %v2584
      %v2631 = vpop.permute.xlu0 %2630
      %2634 = vset.pattern.permute.xlu0 0
      %2635 = vperm.xlu0 %2634, %v2585
      %v2636 = vpop.permute.xlu0 %2635
      %2639 = vset.pattern.permute.xlu0 0
      %2640 = vperm.xlu0 %2639, %v2586
      %v2641 = vpop.permute.xlu0 %2640
      %2644 = vset.pattern.permute.xlu0 0
      %2645 = vperm.xlu0 %2644, %v2587
      %v2646 = vpop.permute.xlu0 %2645
      %2649 = vset.pattern.permute.xlu0 0
      %2650 = vperm.xlu0 %2649, %v2588
      %v2651 = vpop.permute.xlu0 %2650
      %2654 = vset.pattern.permute.xlu0 0
      %2655 = vperm.xlu0 %2654, %v2589
      %v2656 = vpop.permute.xlu0 %2655
      %2659 = vset.pattern.permute.xlu0 0
      %2660 = vperm.xlu0 %2659, %v2590
      %v2661 = vpop.permute.xlu0 %2660
      %2664 = vset.pattern.permute.xlu0 0
      %2665 = vperm.xlu0 %2664, %v2591
      %v2666 = vpop.permute.xlu0 %2665
      %2669 = vset.pattern.permute.xlu0 0
      %2670 = vperm.xlu0 %2669, %v2592
      %v2671 = vpop.permute.xlu0 %2670
      %v2673 = vmul.f32 %v2529, %v2596
      %v2674 = vmul.f32 %v2530, %v2596
      %v2675 = vmul.f32 %v2531, %v2596
      %v2676 = vmul.f32 %v2532, %v2601
      %v2677 = vmul.f32 %v2533, %v2601
      %v2678 = vmul.f32 %v2534, %v2601
      %v2679 = vmul.f32 %v2535, %v2606
      %v2680 = vmul.f32 %v2536, %v2606
      %v2681 = vmul.f32 %v2537, %v2606
      %v2682 = vmul.f32 %v2538, %v2611
      %v2683 = vmul.f32 %v2539, %v2611
      %v2684 = vmul.f32 %v2540, %v2611
      %v2685 = vmul.f32 %v2541, %v2616
      %v2686 = vmul.f32 %v2542, %v2616
      %v2687 = vmul.f32 %v2543, %v2616
      %v2688 = vmul.f32 %v2544, %v2621
      %v2689 = vmul.f32 %v2545, %v2621
      %v2690 = vmul.f32 %v2546, %v2621
      %v2691 = vmul.f32 %v2547, %v2626
      %v2692 = vmul.f32 %v2548, %v2626
      %v2693 = vmul.f32 %v2549, %v2626
      %v2694 = vmul.f32 %v2550, %v2631
      %v2695 = vmul.f32 %v2551, %v2631
      %v2696 = vmul.f32 %v2552, %v2631
      %v2697 = vmul.f32 %v2553, %v2636
      %v2698 = vmul.f32 %v2554, %v2636
      %v2699 = vmul.f32 %v2555, %v2636
      %v2700 = vmul.f32 %v2556, %v2641
      %v2701 = vmul.f32 %v2557, %v2641
      %v2702 = vmul.f32 %v2558, %v2641
      %v2703 = vmul.f32 %v2559, %v2646
      %v2704 = vmul.f32 %v2560, %v2646
      %v2705 = vmul.f32 %v2561, %v2646
      %v2706 = vmul.f32 %v2562, %v2651
      %v2707 = vmul.f32 %v2563, %v2651
      %v2708 = vmul.f32 %v2564, %v2651
      %v2709 = vmul.f32 %v2565, %v2656
      %v2710 = vmul.f32 %v2566, %v2656
      %v2711 = vmul.f32 %v2567, %v2656
      %v2712 = vmul.f32 %v2568, %v2661
      %v2713 = vmul.f32 %v2569, %v2661
      %v2714 = vmul.f32 %v2570, %v2661
      %v2715 = vmul.f32 %v2571, %v2666
      %v2716 = vmul.f32 %v2572, %v2666
      %v2717 = vmul.f32 %v2573, %v2666
      %v2718 = vmul.f32 %v2574, %v2671
      %v2719 = vmul.f32 %v2575, %v2671
      %v2720 = vmul.f32 %v2576, %v2671
      %v2721 = vld [vmem:[%s276] sm:$0xff]
      %v2722 = vld [vmem:[%s276 + $0x8] sm:$0xff]
      %v2723 = vld [vmem:[%s276 + $0x10] sm:$0xff]
      %v2724 = vld [vmem:[%s276 + $0x18] sm:$0xff]
      %v2725 = vld [vmem:[%s276 + $0x20] sm:$0xff]
      %v2726 = vld [vmem:[%s276 + $0x28] sm:$0xff]
      %v2727 = vld [vmem:[%s276 + $0x30] sm:$0xff]
      %v2728 = vld [vmem:[%s276 + $0x38] sm:$0xff]
      %v2729 = vld [vmem:[%s276 + $0x40] sm:$0xff]
      %v2730 = vld [vmem:[%s276 + $0x48] sm:$0xff]
      %v2731 = vld [vmem:[%s276 + $0x50] sm:$0xff]
      %v2732 = vld [vmem:[%s276 + $0x58] sm:$0xff]
      %v2733 = vld [vmem:[%s276 + $0x60] sm:$0xff]
      %v2734 = vld [vmem:[%s276 + $0x68] sm:$0xff]
      %v2735 = vld [vmem:[%s276 + $0x70] sm:$0xff]
      %v2736 = vld [vmem:[%s276 + $0x78] sm:$0xff]
      %2738 = vset.pattern.permute.xlu0 0
      %2739 = vperm.xlu0 %2738, %v2721
      %v2740 = vpop.permute.xlu0 %2739
      %2743 = vset.pattern.permute.xlu0 0
      %2744 = vperm.xlu0 %2743, %v2722
      %v2745 = vpop.permute.xlu0 %2744
      %2748 = vset.pattern.permute.xlu0 0
      %2749 = vperm.xlu0 %2748, %v2723
      %v2750 = vpop.permute.xlu0 %2749
      %2753 = vset.pattern.permute.xlu0 0
      %2754 = vperm.xlu0 %2753, %v2724
      %v2755 = vpop.permute.xlu0 %2754
      %2758 = vset.pattern.permute.xlu0 0
      %2759 = vperm.xlu0 %2758, %v2725
      %v2760 = vpop.permute.xlu0 %2759
      %2763 = vset.pattern.permute.xlu0 0
      %2764 = vperm.xlu0 %2763, %v2726
      %v2765 = vpop.permute.xlu0 %2764
      %2768 = vset.pattern.permute.xlu0 0
      %2769 = vperm.xlu0 %2768, %v2727
      %v2770 = vpop.permute.xlu0 %2769
      %2773 = vset.pattern.permute.xlu0 0
      %2774 = vperm.xlu0 %2773, %v2728
      %v2775 = vpop.permute.xlu0 %2774
      %2778 = vset.pattern.permute.xlu0 0
      %2779 = vperm.xlu0 %2778, %v2729
      %v2780 = vpop.permute.xlu0 %2779
      %2783 = vset.pattern.permute.xlu0 0
      %2784 = vperm.xlu0 %2783, %v2730
      %v2785 = vpop.permute.xlu0 %2784
      %2788 = vset.pattern.permute.xlu0 0
      %2789 = vperm.xlu0 %2788, %v2731
      %v2790 = vpop.permute.xlu0 %2789
      %2793 = vset.pattern.permute.xlu0 0
      %2794 = vperm.xlu0 %2793, %v2732
      %v2795 = vpop.permute.xlu0 %2794
      %2798 = vset.pattern.permute.xlu0 0
      %2799 = vperm.xlu0 %2798, %v2733
      %v2800 = vpop.permute.xlu0 %2799
      %2803 = vset.pattern.permute.xlu0 0
      %2804 = vperm.xlu0 %2803, %v2734
      %v2805 = vpop.permute.xlu0 %2804
      %2808 = vset.pattern.permute.xlu0 0
      %2809 = vperm.xlu0 %2808, %v2735
      %v2810 = vpop.permute.xlu0 %2809
      %2813 = vset.pattern.permute.xlu0 0
      %2814 = vperm.xlu0 %2813, %v2736
      %v2815 = vpop.permute.xlu0 %2814
      %v2817 = vadd.f32 %v2673, %v2740
      %v2818 = vadd.f32 %v2674, %v2740
      %v2819 = vadd.f32 %v2675, %v2740
      %v2820 = vadd.f32 %v2676, %v2745
      %v2821 = vadd.f32 %v2677, %v2745
      %v2822 = vadd.f32 %v2678, %v2745
      %v2823 = vadd.f32 %v2679, %v2750
      %v2824 = vadd.f32 %v2680, %v2750
      %v2825 = vadd.f32 %v2681, %v2750
      %v2826 = vadd.f32 %v2682, %v2755
      %v2827 = vadd.f32 %v2683, %v2755
      %v2828 = vadd.f32 %v2684, %v2755
      %v2829 = vadd.f32 %v2685, %v2760
      %v2830 = vadd.f32 %v2686, %v2760
      %v2831 = vadd.f32 %v2687, %v2760
      %v2832 = vadd.f32 %v2688, %v2765
      %v2833 = vadd.f32 %v2689, %v2765
      %v2834 = vadd.f32 %v2690, %v2765
      %v2835 = vadd.f32 %v2691, %v2770
      %v2836 = vadd.f32 %v2692, %v2770
      %v2837 = vadd.f32 %v2693, %v2770
      %v2838 = vadd.f32 %v2694, %v2775
      %v2839 = vadd.f32 %v2695, %v2775
      %v2840 = vadd.f32 %v2696, %v2775
      %v2841 = vadd.f32 %v2697, %v2780
      %v2842 = vadd.f32 %v2698, %v2780
      %v2843 = vadd.f32 %v2699, %v2780
      %v2844 = vadd.f32 %v2700, %v2785
      %v2845 = vadd.f32 %v2701, %v2785
      %v2846 = vadd.f32 %v2702, %v2785
      %v2847 = vadd.f32 %v2703, %v2790
      %v2848 = vadd.f32 %v2704, %v2790
      %v2849 = vadd.f32 %v2705, %v2790
      %v2850 = vadd.f32 %v2706, %v2795
      %v2851 = vadd.f32 %v2707, %v2795
      %v2852 = vadd.f32 %v2708, %v2795
      %v2853 = vadd.f32 %v2709, %v2800
      %v2854 = vadd.f32 %v2710, %v2800
      %v2855 = vadd.f32 %v2711, %v2800
      %v2856 = vadd.f32 %v2712, %v2805
      %v2857 = vadd.f32 %v2713, %v2805
      %v2858 = vadd.f32 %v2714, %v2805
      %v2859 = vadd.f32 %v2715, %v2810
      %v2860 = vadd.f32 %v2716, %v2810
      %v2861 = vadd.f32 %v2717, %v2810
      %v2862 = vadd.f32 %v2718, %v2815
      %v2863 = vadd.f32 %v2719, %v2815
      %v2864 = vadd.f32 %v2720, %v2815
      %v2865 = vmax.f32 %v2817, 0.0
      %v2866 = vmax.f32 %v2818, 0.0
      %v2867 = vmax.f32 %v2819, 0.0
      %v2868 = vmax.f32 %v2820, 0.0
      %v2869 = vmax.f32 %v2821, 0.0
      %v2870 = vmax.f32 %v2822, 0.0
      %v2871 = vmax.f32 %v2823, 0.0
      %v2872 = vmax.f32 %v2824, 0.0
      %v2873 = vmax.f32 %v2825, 0.0
      %v2874 = vmax.f32 %v2826, 0.0
      %v2875 = vmax.f32 %v2827, 0.0
      %v2876 = vmax.f32 %v2828, 0.0
      %v2877 = vmax.f32 %v2829, 0.0
      %v2878 = vmax.f32 %v2830, 0.0
      %v2879 = vmax.f32 %v2831, 0.0
      %v2880 = vmax.f32 %v2832, 0.0
      %v2881 = vmax.f32 %v2833, 0.0
      %v2882 = vmax.f32 %v2834, 0.0
      %v2883 = vmax.f32 %v2835, 0.0
      %v2884 = vmax.f32 %v2836, 0.0
      %v2885 = vmax.f32 %v2837, 0.0
      %v2886 = vmax.f32 %v2838, 0.0
      %v2887 = vmax.f32 %v2839, 0.0
      %v2888 = vmax.f32 %v2840, 0.0
      %v2889 = vmax.f32 %v2841, 0.0
      %v2890 = vmax.f32 %v2842, 0.0
      %v2891 = vmax.f32 %v2843, 0.0
      %v2892 = vmax.f32 %v2844, 0.0
      %v2893 = vmax.f32 %v2845, 0.0
      %v2894 = vmax.f32 %v2846, 0.0
      %v2895 = vmax.f32 %v2847, 0.0
      %v2896 = vmax.f32 %v2848, 0.0
      %v2897 = vmax.f32 %v2849, 0.0
      %v2898 = vmax.f32 %v2850, 0.0
      %v2899 = vmax.f32 %v2851, 0.0
      %v2900 = vmax.f32 %v2852, 0.0
      %v2901 = vmax.f32 %v2853, 0.0
      %v2902 = vmax.f32 %v2854, 0.0
      %v2903 = vmax.f32 %v2855, 0.0
      %v2904 = vmax.f32 %v2856, 0.0
      %v2905 = vmax.f32 %v2857, 0.0
      %v2906 = vmax.f32 %v2858, 0.0
      %v2907 = vmax.f32 %v2859, 0.0
      %v2908 = vmax.f32 %v2860, 0.0
      %v2909 = vmax.f32 %v2861, 0.0
      %v2910 = vmax.f32 %v2862, 0.0
      %v2911 = vmax.f32 %v2863, 0.0
      %v2912 = vmax.f32 %v2864, 0.0
      %2913 = vst [vmem:[%s287] sm:$0xff] %v2865
      %2914 = vst [vmem:[%s287 + $0x8] sm:$0xff] %v2866
      %vm2915 = vcmask 261120
      %2916 = vst.msk [vmem:[%s287 + $0x10] sm:$0xff] %vm2915, %v2867
      %2917 = vst [vmem:[%s287 + $0x18] sm:$0xff] %v2868
      %2918 = vst [vmem:[%s287 + $0x20] sm:$0xff] %v2869
      %2919 = vst.msk [vmem:[%s287 + $0x28] sm:$0xff] %vm2915, %v2870
      %2920 = vst [vmem:[%s287 + $0x30] sm:$0xff] %v2871
      %2921 = vst [vmem:[%s287 + $0x38] sm:$0xff] %v2872
      %2922 = vst.msk [vmem:[%s287 + $0x40] sm:$0xff] %vm2915, %v2873
      %2923 = vst [vmem:[%s287 + $0x48] sm:$0xff] %v2874
      %2924 = vst [vmem:[%s287 + $0x50] sm:$0xff] %v2875
      %2925 = vst.msk [vmem:[%s287 + $0x58] sm:$0xff] %vm2915, %v2876
      %2926 = vst [vmem:[%s287 + $0x60] sm:$0xff] %v2877
      %2927 = vst [vmem:[%s287 + $0x68] sm:$0xff] %v2878
      %2928 = vst.msk [vmem:[%s287 + $0x70] sm:$0xff] %vm2915, %v2879
      %2929 = vst [vmem:[%s287 + $0x78] sm:$0xff] %v2880
      %2930 = vst [vmem:[%s287 + $0x80] sm:$0xff] %v2881
      %2931 = vst.msk [vmem:[%s287 + $0x88] sm:$0xff] %vm2915, %v2882
      %2932 = vst [vmem:[%s287 + $0x90] sm:$0xff] %v2883
      %2933 = vst [vmem:[%s287 + $0x98] sm:$0xff] %v2884
      %2934 = vst.msk [vmem:[%s287 + $0xa0] sm:$0xff] %vm2915, %v2885
      %2935 = vst [vmem:[%s287 + $0xa8] sm:$0xff] %v2886
      %2936 = vst [vmem:[%s287 + $0xb0] sm:$0xff] %v2887
      %2937 = vst.msk [vmem:[%s287 + $0xb8] sm:$0xff] %vm2915, %v2888
      %2938 = vst [vmem:[%s287 + $0xc0] sm:$0xff] %v2889
      %2939 = vst [vmem:[%s287 + $0xc8] sm:$0xff] %v2890
      %2940 = vst.msk [vmem:[%s287 + $0xd0] sm:$0xff] %vm2915, %v2891
      %2941 = vst [vmem:[%s287 + $0xd8] sm:$0xff] %v2892
      %2942 = vst [vmem:[%s287 + $0xe0] sm:$0xff] %v2893
      %2943 = vst.msk [vmem:[%s287 + $0xe8] sm:$0xff] %vm2915, %v2894
      %2944 = vst [vmem:[%s287 + $0xf0] sm:$0xff] %v2895
      %2945 = vst [vmem:[%s287 + $0xf8] sm:$0xff] %v2896
      %2946 = vst.msk [vmem:[%s287 + $0x100] sm:$0xff] %vm2915, %v2897
      %2947 = vst [vmem:[%s287 + $0x108] sm:$0xff] %v2898
      %2948 = vst [vmem:[%s287 + $0x110] sm:$0xff] %v2899
      %2949 = vst.msk [vmem:[%s287 + $0x118] sm:$0xff] %vm2915, %v2900
      %2950 = vst [vmem:[%s287 + $0x120] sm:$0xff] %v2901
      %2951 = vst [vmem:[%s287 + $0x128] sm:$0xff] %v2902
      %2952 = vst.msk [vmem:[%s287 + $0x130] sm:$0xff] %vm2915, %v2903
      %2953 = vst [vmem:[%s287 + $0x138] sm:$0xff] %v2904
      %2954 = vst [vmem:[%s287 + $0x140] sm:$0xff] %v2905
      %2955 = vst.msk [vmem:[%s287 + $0x148] sm:$0xff] %vm2915, %v2906
      %2956 = vst [vmem:[%s287 + $0x150] sm:$0xff] %v2907
      %2957 = vst [vmem:[%s287 + $0x158] sm:$0xff] %v2908
      %2958 = vst.msk [vmem:[%s287 + $0x160] sm:$0xff] %vm2915, %v2909
      %2959 = vst [vmem:[%s287 + $0x168] sm:$0xff] %v2910
      %2960 = vst [vmem:[%s287 + $0x170] sm:$0xff] %v2911
      %2961 = vst.msk [vmem:[%s287 + $0x178] sm:$0xff] %vm2915, %v2912
      %s2962 = smul.u32 16, %s20
      %p2963 = scmp.lt.s32.totalorder %s19, 1
      %s2964 = scalar_select %p2963, %s19, 1
      %p2965 = scmp.lt.s32.totalorder %s2962, 15
      %s2966 = scalar_select %p2965, %s2962, 15
      %s2967 = smul.addr %s2966, 3
      %s2968 = smul.addr %s2964, 48
      %s2969 = sadd.s32 %s2967, %s2968
      %s2970 = smul.addr %s2969, 8
      %s2971 = scalar_lea.vmem %s4, %s2970
      // Predicated region
      $region37: #{bn_conv2d_forward.1} parent=35 // pred_check
        %p2972 = pneg %p151
      $region38: #{bn_conv2d_forward.1} parent=35 // pred_check_branch
        %2974 = sbr.rel (%p2972) target = $region40
      $region39: #{bn_conv2d_forward.1} parent=35 // pred_region
        %s2975 = smul.u32 16, %s20
      $region40: #{bn_conv2d_forward.1} parent=35 // pred_fallthru
        _
    $region36: #{bn_conv2d_forward.1} parent=5 // pred_fallthru
      _
    %p2976 = scmp.le.s32.totalorder 2, %s10
    // Predicated region
    $region41: #{bn_conv2d_forward.1} parent=5 // pred_check
      %p2977 = pneg %p2976
    $region42: #{bn_conv2d_forward.1} parent=5 // pred_check_branch
      %2979 = sbr.rel (%p2977) target = $region44
    $region43: #{bn_conv2d_forward.1} parent=5 // pred_region
      %s2980 = ssub.s32 %s10, 2
      // Predicated region
      $region45: #{bn_conv2d_forward.1} parent=43 // pred_check
        %p2981 = pneg %p157
      $region46: #{bn_conv2d_forward.1} parent=43 // pred_check_branch
        %2983 = sbr.rel (%p2981) target = $region48
      $region47: #{bn_conv2d_forward.1} parent=43 // pred_region
        %s2984 = smul.u32 16, %s22
        %p2985 = scmp.lt.s32.totalorder %s21, 1
        %s2986 = scalar_select %p2985, %s21, 1
        %p2987 = scmp.lt.s32.totalorder %s2984, 15
        %s2988 = scalar_select %p2987, %s2984, 15
        %s2989 = smul.addr %s2988, 3
        %s2990 = smul.addr %s2986, 48
        %s2991 = sadd.s32 %s2989, %s2990
        %s2992 = smul.addr %s2991, 8
        %s2993 = scalar_lea.vmem %s4, %s2992
      $region48: #{bn_conv2d_forward.1} parent=43 // pred_fallthru
        _
    $region44: #{bn_conv2d_forward.1} parent=5 // pred_fallthru
      _
  $region6: #{bn_conv2d_forward.1} parent=0 // loop_footer
    %s14 = sadd.s32 1, %s10
  $region7: #{bn_conv2d_forward.1} parent=0 // loop_footer_branch
    %9 = sbr.rel target = $region3
  $region8: #{bn_conv2d_forward.1} parent=0 // loop_exit
    _

</llo_original>
